<compile_context>
chip_gen: v5e
topology: v5e:2x2
jax: 0.10.0
libtpu: 0.0.40
codegen_flags: <defaults>
</compile_context>

<pallas_src>
import jax
import jax.numpy as jnp
from jax.experimental import pallas as pl
from jax.experimental.pallas import tpu as pltpu

IN_FEATURES = 28 * 28  # 784


def _round_up(x, m):
    return ((x + m - 1) // m) * m


def mlp_kernel(x_ref, w1_ref, b1_ref, w2_ref, b2_ref, o_ref):
    # fc1 (bf16 inputs, f32 accumulation) + bias/ReLU in f32
    h = jnp.dot(x_ref[...], w1_ref[...], preferred_element_type=jnp.float32)
    h = jnp.maximum(h + b1_ref[...], 0.0)
    # fc2 (cast activations back to bf16 for the MXU) + bias/ReLU in f32
    y = jnp.dot(h.astype(jnp.bfloat16), w2_ref[...],
                preferred_element_type=jnp.float32)
    o_ref[...] = jnp.maximum(y + b2_ref[...], 0.0).astype(o_ref.dtype)


def single_net_forward(x, w1, b1, w2, b2, *, tm=256):
    """x: (B, 1, 28, 28) / (B, 28, 28) / (B, 784) float32.
    w1: (784, n_nodes), w2: (n_nodes, n_nodes)   [= transpose of nn.Linear.weight]
    b1, b2: (n_nodes,) or (1, n_nodes).
    Returns (B, n_nodes) float32."""
    B = x.shape[0]
    n_nodes = w1.shape[1]
    x2d = x.reshape(B, IN_FEATURES).astype(jnp.float32)

    in_pad = _round_up(IN_FEATURES, 128)      # 896
    n_pad = _round_up(n_nodes, 128)           # 384 for n_nodes=300

    # Batch tile: MXU-friendly 256 rows, shrunk (to a multiple of 8) for tiny batches.
    tm_eff = min(tm, _round_up(max(B, 1), 8))
    b_pad = _round_up(B, tm_eff)
    grid = b_pad // tm_eff

    # Zero-pad + cast. Padded rows/cols are zero, so sliced results are unchanged.
    xp = jnp.zeros((b_pad, in_pad), jnp.bfloat16)
    xp = xp.at[:B, :IN_FEATURES].set(x2d.astype(jnp.bfloat16))
    w1p = jnp.zeros((in_pad, n_pad), jnp.bfloat16)
    w1p = w1p.at[:IN_FEATURES, :n_nodes].set(w1.astype(jnp.bfloat16))
    w2p = jnp.zeros((n_pad, n_pad), jnp.bfloat16)
    w2p = w2p.at[:n_nodes, :n_nodes].set(w2.astype(jnp.bfloat16))
    b1p = jnp.zeros((1, n_pad), jnp.float32)
    b1p = b1p.at[:, :n_nodes].set(b1.reshape(1, n_nodes).astype(jnp.float32))
    b2p = jnp.zeros((1, n_pad), jnp.float32)
    b2p = b2p.at[:, :n_nodes].set(b2.reshape(1, n_nodes).astype(jnp.float32))

    out_padded = pl.pallas_call(
        mlp_kernel,
        out_shape=jax.ShapeDtypeStruct((b_pad, n_pad), jnp.float32),
        grid_spec=pl.GridSpec(
            grid=(grid,),
            in_specs=[
                pl.BlockSpec((tm_eff, in_pad), lambda i: (i, 0)),   # x tile: pipelined
                pl.BlockSpec((in_pad, n_pad), lambda i: (0, 0)),    # w1: VMEM-resident
                pl.BlockSpec((1, n_pad), lambda i: (0, 0)),         # b1
                pl.BlockSpec((n_pad, n_pad), lambda i: (0, 0)),     # w2: VMEM-resident
                pl.BlockSpec((1, n_pad), lambda i: (0, 0)),         # b2
            ],
            out_specs=pl.BlockSpec((tm_eff, n_pad), lambda i: (i, 0)),
        ),
        compiler_params=pltpu.CompilerParams(
            dimension_semantics=("parallel",),
        ),
    )(xp, w1p, b1p, w2p, b2p)

    return out_padded[:B, :n_nodes]


def init_params(key, n_nodes=300):
    """Deterministic init matching nn.Linear's uniform(-1/sqrt(fan_in), 1/sqrt(fan_in))."""
    k1, k2, k3, k4 = jax.random.split(key, 4)
    fan1 = IN_FEATURES
    bound1 = 1.0 / jnp.sqrt(fan1)
    w1 = jax.random.uniform(k1, (fan1, n_nodes), jnp.float32, -bound1, bound1)
    b1 = jax.random.uniform(k2, (1, n_nodes), jnp.float32, -bound1, bound1)
    fan2 = n_nodes
    bound2 = 1.0 / jnp.sqrt(fan2)
    w2 = jax.random.uniform(k3, (fan2, n_nodes), jnp.float32, -bound2, bound2)
    b2 = jax.random.uniform(k4, (1, n_nodes), jnp.float32, -bound2, bound2)
    return w1, b1, w2, b2


def _reference_bf16(x2d, w1, b1, w2, b2):
    """Reference with the same bf16-input / f32-accumulate policy as the kernel."""
    h = jnp.dot(x2d.astype(jnp.bfloat16), w1.astype(jnp.bfloat16),
                preferred_element_type=jnp.float32)
    h = jnp.maximum(h + b1, 0.0)
    y = jnp.dot(h.astype(jnp.bfloat16), w2.astype(jnp.bfloat16),
                preferred_element_type=jnp.float32)
    return jnp.maximum(y + b2, 0.0)


def _reference_f32(x2d, w1, b1, w2, b2):
    h = jnp.maximum(x2d @ w1 + b1, 0.0)
    return jnp.maximum(h @ w2 + b2, 0.0)


if __name__ == "__main__":
    key = jax.random.PRNGKey(0)
    kx, kp = jax.random.split(key)

    n_nodes = 300
    w1, b1, w2, b2 = init_params(kp, n_nodes)

    ok = True
    for B in (2, 384):  # tiny batch + a batch that exercises larger tiles
        x = jax.random.normal(jax.random.fold_in(kx, B), (B, 1, 28, 28), jnp.float32)
        out = single_net_forward(x, w1, b1, w2, b2)
        out = jax.block_until_ready(out)
        assert out.shape == (B, n_nodes)

        x2d = x.reshape(B, IN_FEATURES)
        ref_matched = _reference_bf16(x2d, w1, b1, w2, b2)
        ref_f32 = _reference_f32(x2d, w1, b1, w2, b2)

        # tight check vs. precision-matched reference
        ok &= bool(jnp.allclose(out, ref_matched, atol=5e-3, rtol=5e-3))
        # loose check vs. full-f32 reference (bf16 weight quantization error only)
        ok &= bool(jnp.allclose(out, ref_f32, atol=5e-2, rtol=5e-2))

    assert ok, "kernel output mismatch vs reference"
    print("KERNEL_OK")
</pallas_src>

<mosaic_0001>
module attributes {stable_mosaic.version = 11 : i64} {
  func.func @mlp_kernel(%arg0: i32, %arg1: memref<8x896xbf16, #tpu.memory_space<vmem>>, %arg2: memref<896x384xbf16, #tpu.memory_space<vmem>>, %arg3: memref<1x384xf32, #tpu.memory_space<vmem>>, %arg4: memref<384x384xbf16, #tpu.memory_space<vmem>>, %arg5: memref<1x384xf32, #tpu.memory_space<vmem>>, %arg6: memref<8x384xf32, #tpu.memory_space<vmem>>) attributes {dimension_semantics = [#tpu.dimension_semantics<parallel>], iteration_bounds = array<i64: 1>, scalar_prefetch = 0 : i64, scratch_operands = 0 : i64, tpu.core_type = #tpu.core_type<tc>, window_params = [{transform_indices = @transform_0, window_bounds = array<i64: 8, 896>}, {pipeline_mode = #tpu.pipeline_mode<synchronous>, transform_indices = @transform_1, window_bounds = array<i64: 896, 384>}, {pipeline_mode = #tpu.pipeline_mode<synchronous>, transform_indices = @transform_2, window_bounds = array<i64: 1, 384>}, {pipeline_mode = #tpu.pipeline_mode<synchronous>, transform_indices = @transform_3, window_bounds = array<i64: 384, 384>}, {pipeline_mode = #tpu.pipeline_mode<synchronous>, transform_indices = @transform_4, window_bounds = array<i64: 1, 384>}, {transform_indices = @transform_5, window_bounds = array<i64: 8, 384>}]} {
    %c0 = arith.constant 0 : index
    %c0_0 = arith.constant 0 : index
    %0 = vector.load %arg1[%c0, %c0_0] : memref<8x896xbf16, #tpu.memory_space<vmem>>, vector<8x896xbf16>
    %c0_1 = arith.constant 0 : index
    %c0_2 = arith.constant 0 : index
    %1 = vector.load %arg2[%c0_1, %c0_2] : memref<896x384xbf16, #tpu.memory_space<vmem>>, vector<896x384xbf16>
    %cst = arith.constant dense<0.000000e+00> : vector<8x384xf32>
    %2 = tpu.matmul %0, %1, %cst {dimension_numbers = #tpu.dot_dimension_numbers<[1], [0], [0], [1], [0, 0, 1, 1], [], []>} : vector<8x896xbf16>, vector<896x384xbf16>, vector<8x384xf32> -> vector<8x384xf32>
    %c0_3 = arith.constant 0 : index
    %c0_4 = arith.constant 0 : index
    %3 = vector.load %arg3[%c0_3, %c0_4] : memref<1x384xf32, #tpu.memory_space<vmem>>, vector<1x384xf32>
    %4 = vector.broadcast %3 : vector<1x384xf32> to vector<8x384xf32>
    %5 = arith.addf %2, %4 : vector<8x384xf32>
    %cst_5 = arith.constant 0.000000e+00 : f32
    %6 = vector.broadcast %cst_5 : f32 to vector<8x384xf32>
    %7 = arith.maximumf %5, %6 : vector<8x384xf32>
    %8 = arith.truncf %7 : vector<8x384xf32> to vector<8x384xbf16>
    %c0_6 = arith.constant 0 : index
    %c0_7 = arith.constant 0 : index
    %9 = vector.load %arg4[%c0_6, %c0_7] : memref<384x384xbf16, #tpu.memory_space<vmem>>, vector<384x384xbf16>
    %cst_8 = arith.constant dense<0.000000e+00> : vector<8x384xf32>
    %10 = tpu.matmul %8, %9, %cst_8 {dimension_numbers = #tpu.dot_dimension_numbers<[1], [0], [0], [1], [0, 0, 1, 1], [], []>} : vector<8x384xbf16>, vector<384x384xbf16>, vector<8x384xf32> -> vector<8x384xf32>
    %c0_9 = arith.constant 0 : index
    %c0_10 = arith.constant 0 : index
    %11 = vector.load %arg5[%c0_9, %c0_10] : memref<1x384xf32, #tpu.memory_space<vmem>>, vector<1x384xf32>
    %12 = vector.broadcast %11 : vector<1x384xf32> to vector<8x384xf32>
    %13 = arith.addf %10, %12 : vector<8x384xf32>
    %cst_11 = arith.constant 0.000000e+00 : f32
    %14 = vector.broadcast %cst_11 : f32 to vector<8x384xf32>
    %15 = arith.maximumf %13, %14 : vector<8x384xf32>
    %c0_12 = arith.constant 0 : index
    %c0_13 = arith.constant 0 : index
    %16 = vector.load %arg6[%c0_12, %c0_13] : memref<8x384xf32, #tpu.memory_space<vmem>>, vector<8x384xf32>
    tpu.vector_store %arg6[%c0_12, %c0_13], %15 {strides = array<i32>} : memref<8x384xf32, #tpu.memory_space<vmem>>, vector<8x384xf32>,
    return
  }
  func.func @transform_0(%arg0: i32) -> (i32, i32) {
    %c0_i32 = arith.constant 0 : i32
    %c0_i32_0 = arith.constant 0 : i32
    return %arg0, %c0_i32 : i32, i32
  }
  func.func @transform_1(%arg0: i32) -> (i32, i32) {
    %c0_i32 = arith.constant 0 : i32
    %c0_i32_0 = arith.constant 0 : i32
    %c0_i32_1 = arith.constant 0 : i32
    return %c0_i32, %c0_i32_0 : i32, i32
  }
  func.func @transform_2(%arg0: i32) -> (i32, i32) {
    %c0_i32 = arith.constant 0 : i32
    %c0_i32_0 = arith.constant 0 : i32
    %c0_i32_1 = arith.constant 0 : i32
    return %c0_i32, %c0_i32_0 : i32, i32
  }
  func.func @transform_3(%arg0: i32) -> (i32, i32) {
    %c0_i32 = arith.constant 0 : i32
    %c0_i32_0 = arith.constant 0 : i32
    %c0_i32_1 = arith.constant 0 : i32
    return %c0_i32, %c0_i32_0 : i32, i32
  }
  func.func @transform_4(%arg0: i32) -> (i32, i32) {
    %c0_i32 = arith.constant 0 : i32
    %c0_i32_0 = arith.constant 0 : i32
    %c0_i32_1 = arith.constant 0 : i32
    return %c0_i32, %c0_i32_0 : i32, i32
  }
  func.func @transform_5(%arg0: i32) -> (i32, i32) {
    %c0_i32 = arith.constant 0 : i32
    %c0_i32_0 = arith.constant 0 : i32
    return %arg0, %c0_i32 : i32, i32
  }
}

</mosaic_0001>

<llo_original>
// kernel: tpu_custom_call.1
$region0: #{tpu_custom_call.1}
  #allocation0 [shape = 'u32[]', space=smem, size = 0x4, offset = 0x4, fixed_abs, tag = 'smem constant byte address 0x4 - core index']
  #allocation1 [shape = 'u32[72,128]{1,0:T(1,128)}', space=vmem, size = 0x9000, scoped, tag = 'internal scratch']
  %s0 = inlined_call_operand.hbm [shape: bf16[8,896], index: 0, kind: input, shape index: {}]
  %s1 = inlined_call_operand.hbm [shape: bf16[896,384], index: 1, kind: input, shape index: {}]
  %s2 = inlined_call_operand.hbm [shape: f32[1,384], index: 2, kind: input, shape index: {}]
  %s3 = inlined_call_operand.hbm [shape: bf16[384,384], index: 3, kind: input, shape index: {}]
  %s4 = inlined_call_operand.vmem [shape: f32[1,384], index: 4, kind: input, shape index: {}]
  %s5 = inlined_call_operand.hbm [shape: f32[8,384], index: 5, kind: output, shape index: {}]
  %s6 = sld [smem:[#allocation0]]
  $region46: #{tpu_custom_call.1} parent=0
    _
  %s8 = ssub.s32 1, %s6
  %s9 = scalar_select 0, %s8, %s6
  $region1: #{tpu_custom_call.1} parent=0
    #allocation2 [shape = 'u8[14336]{0}', space=vmem, size = 0x3800, scoped, tag = 'input window, operand 0, single buffered']
    #allocation3 [shape = 's32[1]{0}', space=sflag, size = 0x4, scoped, tag = 'scoped memory for tpu_custom_call.1']
    #allocation4 [shape = 's32[1]{0}', space=sflag, size = 0x4, scoped, tag = 'scoped memory for tpu_custom_call.1']
    #allocation5 [shape = 'u8[688128]{0}', space=vmem, size = 0xa8000, scoped, tag = 'input window, operand 1, single buffered']
    #allocation6 [shape = 's32[1]{0}', space=sflag, size = 0x4, scoped, tag = 'scoped memory for tpu_custom_call.1']
    #allocation7 [shape = 'u8[1536]{0}', space=vmem, size = 0x800, scoped, tag = 'input window, operand 2, single buffered']
    #allocation8 [shape = 'u8[294912]{0}', space=vmem, size = 0x48000, scoped, tag = 'input window, operand 3, single buffered']
    #allocation9 [shape = 's32[1]{0}', space=sflag, size = 0x4, scoped, tag = 'scoped memory for tpu_custom_call.1']
    #allocation10 [shape = 'u8[12288]{0}', space=vmem, size = 0x3000, scoped, tag = 'output window, operand 0, single buffered']
    %10 = vsyncpa [#allocation3], 0
    %11 = vsyncpa [#allocation6], 0
    %12 = vsyncpa [#allocation9], 0
    %13 = vsyncpa [#allocation4], 0
    // Predicated region
    $region2: #{tpu_custom_call.1} parent=1 // pred_check
      _
    $region3: #{tpu_custom_call.1} parent=1 // pred_check_branch
      %15 = sbr.rel (0) target = $region5
    $region4: #{tpu_custom_call.1} parent=1 // pred_region
      %17 = vsyncadd [#allocation3], 0
      %s19 = sshll.u32 %s0, 4
      %s20 = int_to_ptr.hbm [resolvable:$true] %s19
      %s21 = sshll.u32 [#allocation2], 4
      %s22 = int_to_ptr.vmem [resolvable:$true] %s21
      %24 = dma.hbm_to_vmem [thread:$0]  %s20, 448, %s22, [#allocation3]
    $region5: #{tpu_custom_call.1} parent=1 // pred_fallthru
      _
    // Predicated region
    $region6: #{tpu_custom_call.1} parent=1 // pred_check
      _
    $region7: #{tpu_custom_call.1} parent=1 // pred_check_branch
      %26 = sbr.rel (0) target = $region9
    $region8: #{tpu_custom_call.1} parent=1 // pred_region
      %28 = vsyncadd [#allocation6], 0
      %s29 = sshll.u32 %s1, 4
      %s30 = int_to_ptr.hbm [resolvable:$true] %s29
      %s31 = sshll.u32 [#allocation5], 4
      %s32 = int_to_ptr.vmem [resolvable:$true] %s31
      %37 = dma.hbm_to_vmem [thread:$0]  %s30, 21504, %s32, [#allocation6], 192, 192, 12
    $region9: #{tpu_custom_call.1} parent=1 // pred_fallthru
      _
    // Predicated region
    $region10: #{tpu_custom_call.1} parent=1 // pred_check
      _
    $region11: #{tpu_custom_call.1} parent=1 // pred_check_branch
      %39 = sbr.rel (0) target = $region13
    $region12: #{tpu_custom_call.1} parent=1 // pred_region
      %41 = vsyncadd [#allocation6], 0
      %s43 = sshll.u32 %s2, 4
      %s44 = int_to_ptr.hbm [resolvable:$true] %s43
      %s45 = sshll.u32 [#allocation7], 4
      %s46 = int_to_ptr.vmem [resolvable:$true] %s45
      %48 = dma.hbm_to_vmem [thread:$0]  %s44, 48, %s46, [#allocation6]
    $region13: #{tpu_custom_call.1} parent=1 // pred_fallthru
      _
    // Predicated region
    $region14: #{tpu_custom_call.1} parent=1 // pred_check
      _
    $region15: #{tpu_custom_call.1} parent=1 // pred_check_branch
      %50 = sbr.rel (0) target = $region17
    $region16: #{tpu_custom_call.1} parent=1 // pred_region
      %52 = vsyncadd [#allocation9], 0
      %s53 = sshll.u32 %s3, 4
      %s54 = int_to_ptr.hbm [resolvable:$true] %s53
      %s55 = sshll.u32 [#allocation8], 4
      %s56 = int_to_ptr.vmem [resolvable:$true] %s55
      %61 = dma.hbm_to_vmem [thread:$0]  %s54, 9216, %s56, [#allocation9], 192, 192, 12
    $region17: #{tpu_custom_call.1} parent=1 // pred_fallthru
      _
    // Predicated region
    $region18: #{tpu_custom_call.1} parent=1 // pred_check
      _
    $region19: #{tpu_custom_call.1} parent=1 // pred_check_branch
      %63 = sbr.rel (0) target = $region21
    $region20: #{tpu_custom_call.1} parent=1 // pred_region
      _
    $region21: #{tpu_custom_call.1} parent=1 // pred_fallthru
      _
    // Predicated region
    $region22: #{tpu_custom_call.1} parent=1 // pred_check
      _
    $region23: #{tpu_custom_call.1} parent=1 // pred_check_branch
      %65 = sbr.rel (0) target = $region25
    $region24: #{tpu_custom_call.1} parent=1 // pred_region
      %67 = dma.done [#allocation3], 448
    $region25: #{tpu_custom_call.1} parent=1 // pred_fallthru
      _
    // Predicated region
    $region26: #{tpu_custom_call.1} parent=1 // pred_check
      _
    $region27: #{tpu_custom_call.1} parent=1 // pred_check_branch
      %69 = sbr.rel (0) target = $region29
    $region28: #{tpu_custom_call.1} parent=1 // pred_region
      %71 = dma.done [#allocation6], 21504
    $region29: #{tpu_custom_call.1} parent=1 // pred_fallthru
      _
    // Predicated region
    $region30: #{tpu_custom_call.1} parent=1 // pred_check
      _
    $region31: #{tpu_custom_call.1} parent=1 // pred_check_branch
      %73 = sbr.rel (0) target = $region33
    $region32: #{tpu_custom_call.1} parent=1 // pred_region
      %75 = dma.done [#allocation6], 48
    $region33: #{tpu_custom_call.1} parent=1 // pred_fallthru
      _
    // Predicated region
    $region34: #{tpu_custom_call.1} parent=1 // pred_check
      _
    $region35: #{tpu_custom_call.1} parent=1 // pred_check_branch
      %77 = sbr.rel (0) target = $region37
    $region36: #{tpu_custom_call.1} parent=1 // pred_region
      %79 = dma.done [#allocation9], 9216
    $region37: #{tpu_custom_call.1} parent=1 // pred_fallthru
      _
    %v80 = vld [vmem:[#allocation2] sm:$0xff]
    %v81 = vld [vmem:[#allocation2 + $0x8] sm:$0xff]
    %v82 = vld [vmem:[#allocation2 + $0x10] sm:$0xff]
    %v83 = vld [vmem:[#allocation2 + $0x18] sm:$0xf]
    %v84 = vld [vmem:[#allocation5] sm:$0xff]
    %v85 = vld [vmem:[#allocation5 + $0x8] sm:$0xf]
    %v86 = vld [vmem:[#allocation5 + $0xc] sm:$0xff]
    %v87 = vld [vmem:[#allocation5 + $0x14] sm:$0xf]
    %v88 = vld [vmem:[#allocation5 + $0x18] sm:$0xff]
    %v89 = vld [vmem:[#allocation5 + $0x20] sm:$0xf]
    %v90 = vld [vmem:[#allocation5 + $0x24] sm:$0xff]
    %v91 = vld [vmem:[#allocation5 + $0x2c] sm:$0xf]
    %v92 = vld [vmem:[#allocation5 + $0x30] sm:$0xff]
    %v93 = vld [vmem:[#allocation5 + $0x38] sm:$0xf]
    %v94 = vld [vmem:[#allocation5 + $0x3c] sm:$0xff]
    %v95 = vld [vmem:[#allocation5 + $0x44] sm:$0xf]
    %v96 = vld [vmem:[#allocation5 + $0x48] sm:$0xff]
    %v97 = vld [vmem:[#allocation5 + $0x50] sm:$0xf]
    %v98 = vld [vmem:[#allocation5 + $0x54] sm:$0xff]
    %v99 = vld [vmem:[#allocation5 + $0x5c] sm:$0xf]
    %v100 = vld [vmem:[#allocation5 + $0x60] sm:$0xff]
    %v101 = vld [vmem:[#allocation5 + $0x68] sm:$0xf]
    %v102 = vld [vmem:[#allocation5 + $0x6c] sm:$0xff]
    %v103 = vld [vmem:[#allocation5 + $0x74] sm:$0xf]
    %v104 = vld [vmem:[#allocation5 + $0x78] sm:$0xff]
    %v105 = vld [vmem:[#allocation5 + $0x80] sm:$0xf]
    %v106 = vld [vmem:[#allocation5 + $0x84] sm:$0xff]
    %v107 = vld [vmem:[#allocation5 + $0x8c] sm:$0xf]
    %v108 = vld [vmem:[#allocation5 + $0x90] sm:$0xff]
    %v109 = vld [vmem:[#allocation5 + $0x98] sm:$0xf]
    %v110 = vld [vmem:[#allocation5 + $0x9c] sm:$0xff]
    %v111 = vld [vmem:[#allocation5 + $0xa4] sm:$0xf]
    %v112 = vld [vmem:[#allocation5 + $0xa8] sm:$0xff]
    %v113 = vld [vmem:[#allocation5 + $0xb0] sm:$0xf]
    %v114 = vld [vmem:[#allocation5 + $0xb4] sm:$0xff]
    %v115 = vld [vmem:[#allocation5 + $0xbc] sm:$0xf]
    %v116 = vld [vmem:[#allocation5 + $0xc0] sm:$0xff]
    %v117 = vld [vmem:[#allocation5 + $0xc8] sm:$0xf]
    %v118 = vld [vmem:[#allocation5 + $0xcc] sm:$0xff]
    %v119 = vld [vmem:[#allocation5 + $0xd4] sm:$0xf]
    %v120 = vld [vmem:[#allocation5 + $0xd8] sm:$0xff]
    %v121 = vld [vmem:[#allocation5 + $0xe0] sm:$0xf]
    %v122 = vld [vmem:[#allocation5 + $0xe4] sm:$0xff]
    %v123 = vld [vmem:[#allocation5 + $0xec] sm:$0xf]
    %v124 = vld [vmem:[#allocation5 + $0xf0] sm:$0xff]
    %v125 = vld [vmem:[#allocation5 + $0xf8] sm:$0xf]
    %v126 = vld [vmem:[#allocation5 + $0xfc] sm:$0xff]
    %v127 = vld [vmem:[#allocation5 + $0x104] sm:$0xf]
    %v128 = vld [vmem:[#allocation5 + $0x108] sm:$0xff]
    %v129 = vld [vmem:[#allocation5 + $0x110] sm:$0xf]
    %v130 = vld [vmem:[#allocation5 + $0x114] sm:$0xff]
    %v131 = vld [vmem:[#allocation5 + $0x11c] sm:$0xf]
    %v132 = vld [vmem:[#allocation5 + $0x120] sm:$0xff]
    %v133 = vld [vmem:[#allocation5 + $0x128] sm:$0xf]
    %v134 = vld [vmem:[#allocation5 + $0x12c] sm:$0xff]
    %v135 = vld [vmem:[#allocation5 + $0x134] sm:$0xf]
    %v136 = vld [vmem:[#allocation5 + $0x138] sm:$0xff]
    %v137 = vld [vmem:[#allocation5 + $0x140] sm:$0xf]
    %v138 = vld [vmem:[#allocation5 + $0x144] sm:$0xff]
    %v139 = vld [vmem:[#allocation5 + $0x14c] sm:$0xf]
    %v140 = vld [vmem:[#allocation5 + $0x150] sm:$0xff]
    %v141 = vld [vmem:[#allocation5 + $0x158] sm:$0xf]
    %v142 = vld [vmem:[#allocation5 + $0x15c] sm:$0xff]
    %v143 = vld [vmem:[#allocation5 + $0x164] sm:$0xf]
    %v144 = vld [vmem:[#allocation5 + $0x168] sm:$0xff]
    %v145 = vld [vmem:[#allocation5 + $0x170] sm:$0xf]
    %v146 = vld [vmem:[#allocation5 + $0x174] sm:$0xff]
    %v147 = vld [vmem:[#allocation5 + $0x17c] sm:$0xf]
    %v148 = vld [vmem:[#allocation5 + $0x180] sm:$0xff]
    %v149 = vld [vmem:[#allocation5 + $0x188] sm:$0xf]
    %v150 = vld [vmem:[#allocation5 + $0x18c] sm:$0xff]
    %v151 = vld [vmem:[#allocation5 + $0x194] sm:$0xf]
    %v152 = vld [vmem:[#allocation5 + $0x198] sm:$0xff]
    %v153 = vld [vmem:[#allocation5 + $0x1a0] sm:$0xf]
    %v154 = vld [vmem:[#allocation5 + $0x1a4] sm:$0xff]
    %v155 = vld [vmem:[#allocation5 + $0x1ac] sm:$0xf]
    %v156 = vld [vmem:[#allocation5 + $0x1b0] sm:$0xff]
    %v157 = vld [vmem:[#allocation5 + $0x1b8] sm:$0xf]
    %v158 = vld [vmem:[#allocation5 + $0x1bc] sm:$0xff]
    %v159 = vld [vmem:[#allocation5 + $0x1c4] sm:$0xf]
    %v160 = vld [vmem:[#allocation5 + $0x1c8] sm:$0xff]
    %v161 = vld [vmem:[#allocation5 + $0x1d0] sm:$0xf]
    %v162 = vld [vmem:[#allocation5 + $0x1d4] sm:$0xff]
    %v163 = vld [vmem:[#allocation5 + $0x1dc] sm:$0xf]
    %v164 = vld [vmem:[#allocation5 + $0x1e0] sm:$0xff]
    %v165 = vld [vmem:[#allocation5 + $0x1e8] sm:$0xf]
    %v166 = vld [vmem:[#allocation5 + $0x1ec] sm:$0xff]
    %v167 = vld [vmem:[#allocation5 + $0x1f4] sm:$0xf]
    %v168 = vld [vmem:[#allocation5 + $0x1f8] sm:$0xff]
    %v169 = vld [vmem:[#allocation5 + $0x200] sm:$0xf]
    %v170 = vld [vmem:[#allocation5 + $0x204] sm:$0xff]
    %v171 = vld [vmem:[#allocation5 + $0x20c] sm:$0xf]
    %v172 = vld [vmem:[#allocation5 + $0x210] sm:$0xff]
    %v173 = vld [vmem:[#allocation5 + $0x218] sm:$0xf]
    %v174 = vld [vmem:[#allocation5 + $0x21c] sm:$0xff]
    %v175 = vld [vmem:[#allocation5 + $0x224] sm:$0xf]
    %v176 = vld [vmem:[#allocation5 + $0x228] sm:$0xff]
    %v177 = vld [vmem:[#allocation5 + $0x230] sm:$0xf]
    %v178 = vld [vmem:[#allocation5 + $0x234] sm:$0xff]
    %v179 = vld [vmem:[#allocation5 + $0x23c] sm:$0xf]
    %v180 = vld [vmem:[#allocation5 + $0x240] sm:$0xff]
    %v181 = vld [vmem:[#allocation5 + $0x248] sm:$0xf]
    %v182 = vld [vmem:[#allocation5 + $0x24c] sm:$0xff]
    %v183 = vld [vmem:[#allocation5 + $0x254] sm:$0xf]
    %v184 = vld [vmem:[#allocation5 + $0x258] sm:$0xff]
    %v185 = vld [vmem:[#allocation5 + $0x260] sm:$0xf]
    %v186 = vld [vmem:[#allocation5 + $0x264] sm:$0xff]
    %v187 = vld [vmem:[#allocation5 + $0x26c] sm:$0xf]
    %v188 = vld [vmem:[#allocation5 + $0x270] sm:$0xff]
    %v189 = vld [vmem:[#allocation5 + $0x278] sm:$0xf]
    %v190 = vld [vmem:[#allocation5 + $0x27c] sm:$0xff]
    %v191 = vld [vmem:[#allocation5 + $0x284] sm:$0xf]
    %v192 = vld [vmem:[#allocation5 + $0x288] sm:$0xff]
    %v193 = vld [vmem:[#allocation5 + $0x290] sm:$0xf]
    %v194 = vld [vmem:[#allocation5 + $0x294] sm:$0xff]
    %v195 = vld [vmem:[#allocation5 + $0x29c] sm:$0xf]
    %v196 = vld [vmem:[#allocation5 + $0x2a0] sm:$0xff]
    %v197 = vld [vmem:[#allocation5 + $0x2a8] sm:$0xf]
    %v198 = vld [vmem:[#allocation5 + $0x2ac] sm:$0xff]
    %v199 = vld [vmem:[#allocation5 + $0x2b4] sm:$0xf]
    %v200 = vld [vmem:[#allocation5 + $0x2b8] sm:$0xff]
    %v201 = vld [vmem:[#allocation5 + $0x2c0] sm:$0xf]
    %v202 = vld [vmem:[#allocation5 + $0x2c4] sm:$0xff]
    %v203 = vld [vmem:[#allocation5 + $0x2cc] sm:$0xf]
    %v204 = vld [vmem:[#allocation5 + $0x2d0] sm:$0xff]
    %v205 = vld [vmem:[#allocation5 + $0x2d8] sm:$0xf]
    %v206 = vld [vmem:[#allocation5 + $0x2dc] sm:$0xff]
    %v207 = vld [vmem:[#allocation5 + $0x2e4] sm:$0xf]
    %v208 = vld [vmem:[#allocation5 + $0x2e8] sm:$0xff]
    %v209 = vld [vmem:[#allocation5 + $0x2f0] sm:$0xf]
    %v210 = vld [vmem:[#allocation5 + $0x2f4] sm:$0xff]
    %v211 = vld [vmem:[#allocation5 + $0x2fc] sm:$0xf]
    %v212 = vld [vmem:[#allocation5 + $0x300] sm:$0xff]
    %v213 = vld [vmem:[#allocation5 + $0x308] sm:$0xf]
    %v214 = vld [vmem:[#allocation5 + $0x30c] sm:$0xff]
    %v215 = vld [vmem:[#allocation5 + $0x314] sm:$0xf]
    %v216 = vld [vmem:[#allocation5 + $0x318] sm:$0xff]
    %v217 = vld [vmem:[#allocation5 + $0x320] sm:$0xf]
    %v218 = vld [vmem:[#allocation5 + $0x324] sm:$0xff]
    %v219 = vld [vmem:[#allocation5 + $0x32c] sm:$0xf]
    %v220 = vld [vmem:[#allocation5 + $0x330] sm:$0xff]
    %v221 = vld [vmem:[#allocation5 + $0x338] sm:$0xf]
    %v222 = vld [vmem:[#allocation5 + $0x33c] sm:$0xff]
    %v223 = vld [vmem:[#allocation5 + $0x344] sm:$0xf]
    %v224 = vld [vmem:[#allocation5 + $0x348] sm:$0xff]
    %v225 = vld [vmem:[#allocation5 + $0x350] sm:$0xf]
    %v226 = vld [vmem:[#allocation5 + $0x354] sm:$0xff]
    %v227 = vld [vmem:[#allocation5 + $0x35c] sm:$0xf]
    %v228 = vld [vmem:[#allocation5 + $0x360] sm:$0xff]
    %v229 = vld [vmem:[#allocation5 + $0x368] sm:$0xf]
    %v230 = vld [vmem:[#allocation5 + $0x36c] sm:$0xff]
    %v231 = vld [vmem:[#allocation5 + $0x374] sm:$0xf]
    %v232 = vld [vmem:[#allocation5 + $0x378] sm:$0xff]
    %v233 = vld [vmem:[#allocation5 + $0x380] sm:$0xf]
    %v234 = vld [vmem:[#allocation5 + $0x384] sm:$0xff]
    %v235 = vld [vmem:[#allocation5 + $0x38c] sm:$0xf]
    %v236 = vld [vmem:[#allocation5 + $0x390] sm:$0xff]
    %v237 = vld [vmem:[#allocation5 + $0x398] sm:$0xf]
    %v238 = vld [vmem:[#allocation5 + $0x39c] sm:$0xff]
    %v239 = vld [vmem:[#allocation5 + $0x3a4] sm:$0xf]
    %v240 = vld [vmem:[#allocation5 + $0x3a8] sm:$0xff]
    %v241 = vld [vmem:[#allocation5 + $0x3b0] sm:$0xf]
    %v242 = vld [vmem:[#allocation5 + $0x3b4] sm:$0xff]
    %v243 = vld [vmem:[#allocation5 + $0x3bc] sm:$0xf]
    %v244 = vld [vmem:[#allocation5 + $0x3c0] sm:$0xff]
    %v245 = vld [vmem:[#allocation5 + $0x3c8] sm:$0xf]
    %v246 = vld [vmem:[#allocation5 + $0x3cc] sm:$0xff]
    %v247 = vld [vmem:[#allocation5 + $0x3d4] sm:$0xf]
    %v248 = vld [vmem:[#allocation5 + $0x3d8] sm:$0xff]
    %v249 = vld [vmem:[#allocation5 + $0x3e0] sm:$0xf]
    %v250 = vld [vmem:[#allocation5 + $0x3e4] sm:$0xff]
    %v251 = vld [vmem:[#allocation5 + $0x3ec] sm:$0xf]
    %v252 = vld [vmem:[#allocation5 + $0x3f0] sm:$0xff]
    %v253 = vld [vmem:[#allocation5 + $0x3f8] sm:$0xf]
    %v254 = vld [vmem:[#allocation5 + $0x3fc] sm:$0xff]
    %v255 = vld [vmem:[#allocation5 + $0x404] sm:$0xf]
    %v256 = vld [vmem:[#allocation5 + $0x408] sm:$0xff]
    %v257 = vld [vmem:[#allocation5 + $0x410] sm:$0xf]
    %v258 = vld [vmem:[#allocation5 + $0x414] sm:$0xff]
    %v259 = vld [vmem:[#allocation5 + $0x41c] sm:$0xf]
    %v260 = vld [vmem:[#allocation5 + $0x420] sm:$0xff]
    %v261 = vld [vmem:[#allocation5 + $0x428] sm:$0xf]
    %v262 = vld [vmem:[#allocation5 + $0x42c] sm:$0xff]
    %v263 = vld [vmem:[#allocation5 + $0x434] sm:$0xf]
    %v264 = vld [vmem:[#allocation5 + $0x438] sm:$0xff]
    %v265 = vld [vmem:[#allocation5 + $0x440] sm:$0xf]
    %v266 = vld [vmem:[#allocation5 + $0x444] sm:$0xff]
    %v267 = vld [vmem:[#allocation5 + $0x44c] sm:$0xf]
    %v268 = vld [vmem:[#allocation5 + $0x450] sm:$0xff]
    %v269 = vld [vmem:[#allocation5 + $0x458] sm:$0xf]
    %v270 = vld [vmem:[#allocation5 + $0x45c] sm:$0xff]
    %v271 = vld [vmem:[#allocation5 + $0x464] sm:$0xf]
    %v272 = vld [vmem:[#allocation5 + $0x468] sm:$0xff]
    %v273 = vld [vmem:[#allocation5 + $0x470] sm:$0xf]
    %v274 = vld [vmem:[#allocation5 + $0x474] sm:$0xff]
    %v275 = vld [vmem:[#allocation5 + $0x47c] sm:$0xf]
    %v276 = vld [vmem:[#allocation5 + $0x480] sm:$0xff]
    %v277 = vld [vmem:[#allocation5 + $0x488] sm:$0xf]
    %v278 = vld [vmem:[#allocation5 + $0x48c] sm:$0xff]
    %v279 = vld [vmem:[#allocation5 + $0x494] sm:$0xf]
    %v280 = vld [vmem:[#allocation5 + $0x498] sm:$0xff]
    %v281 = vld [vmem:[#allocation5 + $0x4a0] sm:$0xf]
    %v282 = vld [vmem:[#allocation5 + $0x4a4] sm:$0xff]
    %v283 = vld [vmem:[#allocation5 + $0x4ac] sm:$0xf]
    %v284 = vld [vmem:[#allocation5 + $0x4b0] sm:$0xff]
    %v285 = vld [vmem:[#allocation5 + $0x4b8] sm:$0xf]
    %v286 = vld [vmem:[#allocation5 + $0x4bc] sm:$0xff]
    %v287 = vld [vmem:[#allocation5 + $0x4c4] sm:$0xf]
    %v288 = vld [vmem:[#allocation5 + $0x4c8] sm:$0xff]
    %v289 = vld [vmem:[#allocation5 + $0x4d0] sm:$0xf]
    %v290 = vld [vmem:[#allocation5 + $0x4d4] sm:$0xff]
    %v291 = vld [vmem:[#allocation5 + $0x4dc] sm:$0xf]
    %v292 = vld [vmem:[#allocation5 + $0x4e0] sm:$0xff]
    %v293 = vld [vmem:[#allocation5 + $0x4e8] sm:$0xf]
    %v294 = vld [vmem:[#allocation5 + $0x4ec] sm:$0xff]
    %v295 = vld [vmem:[#allocation5 + $0x4f4] sm:$0xf]
    %v296 = vld [vmem:[#allocation5 + $0x4f8] sm:$0xff]
    %v297 = vld [vmem:[#allocation5 + $0x500] sm:$0xf]
    %v298 = vld [vmem:[#allocation5 + $0x504] sm:$0xff]
    %v299 = vld [vmem:[#allocation5 + $0x50c] sm:$0xf]
    %v300 = vld [vmem:[#allocation5 + $0x510] sm:$0xff]
    %v301 = vld [vmem:[#allocation5 + $0x518] sm:$0xf]
    %v302 = vld [vmem:[#allocation5 + $0x51c] sm:$0xff]
    %v303 = vld [vmem:[#allocation5 + $0x524] sm:$0xf]
    %v304 = vld [vmem:[#allocation5 + $0x528] sm:$0xff]
    %v305 = vld [vmem:[#allocation5 + $0x530] sm:$0xf]
    %v306 = vld [vmem:[#allocation5 + $0x534] sm:$0xff]
    %v307 = vld [vmem:[#allocation5 + $0x53c] sm:$0xf]
    %v308 = vld [vmem:[#allocation7] sm:$0x7]
    %v310 = vperm.slane %v308, 0
    %v311 = vperm.slane %v308, 1
    %v312 = vperm.slane %v308, 2
    %v320 = vunpack.c.l.b16 %v80
    %v321 = vunpack.c.h.b16 %v80
    %v322 = vunpack.c.l.b16 %v81
    %v323 = vunpack.c.h.b16 %v81
    %v324 = vunpack.c.l.b16 %v82
    %v325 = vunpack.c.h.b16 %v82
    %v326 = vunpack.c.l.b16 %v83
    %v327 = vpack.c.b16 %v320, %v320
    %v328 = vpack.c.b16 %v321, %v321
    %v329 = vpack.c.b16 %v322, %v322
    %v330 = vpack.c.b16 %v323, %v323
    %v331 = vpack.c.b16 %v324, %v324
    %v332 = vpack.c.b16 %v325, %v325
    %v333 = vpack.c.b16 %v326, %v326
    %v565 = vunpack.c.l.b16 %v84
    %v566 = vunpack.c.h.b16 %v84
    %v567 = vunpack.c.l.b16 %v85
    %v568 = vunpack.c.l.b16 %v86
    %v569 = vunpack.c.h.b16 %v86
    %v570 = vunpack.c.l.b16 %v87
    %v571 = vunpack.c.l.b16 %v88
    %v572 = vunpack.c.h.b16 %v88
    %v573 = vunpack.c.l.b16 %v89
    %v574 = vunpack.c.l.b16 %v90
    %v575 = vunpack.c.h.b16 %v90
    %v576 = vunpack.c.l.b16 %v91
    %v577 = vunpack.c.l.b16 %v92
    %v578 = vunpack.c.h.b16 %v92
    %v579 = vunpack.c.l.b16 %v93
    %v580 = vunpack.c.l.b16 %v94
    %v581 = vunpack.c.h.b16 %v94
    %v582 = vunpack.c.l.b16 %v95
    %v583 = vunpack.c.l.b16 %v96
    %v584 = vunpack.c.h.b16 %v96
    %v585 = vunpack.c.l.b16 %v97
    %v586 = vunpack.c.l.b16 %v98
    %v587 = vunpack.c.h.b16 %v98
    %v588 = vunpack.c.l.b16 %v99
    %v589 = vunpack.c.l.b16 %v100
    %v590 = vunpack.c.h.b16 %v100
    %v591 = vunpack.c.l.b16 %v101
    %v592 = vunpack.c.l.b16 %v102
    %v593 = vunpack.c.h.b16 %v102
    %v594 = vunpack.c.l.b16 %v103
    %v595 = vunpack.c.l.b16 %v104
    %v596 = vunpack.c.h.b16 %v104
    %v597 = vunpack.c.l.b16 %v105
    %v598 = vunpack.c.l.b16 %v106
    %v599 = vunpack.c.h.b16 %v106
    %v600 = vunpack.c.l.b16 %v107
    %v601 = vunpack.c.l.b16 %v108
    %v602 = vunpack.c.h.b16 %v108
    %v603 = vunpack.c.l.b16 %v109
    %v604 = vunpack.c.l.b16 %v110
    %v605 = vunpack.c.h.b16 %v110
    %v606 = vunpack.c.l.b16 %v111
    %v607 = vunpack.c.l.b16 %v112
    %v608 = vunpack.c.h.b16 %v112
    %v609 = vunpack.c.l.b16 %v113
    %v610 = vunpack.c.l.b16 %v114
    %v611 = vunpack.c.h.b16 %v114
    %v612 = vunpack.c.l.b16 %v115
    %v613 = vunpack.c.l.b16 %v116
    %v614 = vunpack.c.h.b16 %v116
    %v615 = vunpack.c.l.b16 %v117
    %v616 = vunpack.c.l.b16 %v118
    %v617 = vunpack.c.h.b16 %v118
    %v618 = vunpack.c.l.b16 %v119
    %v619 = vunpack.c.l.b16 %v120
    %v620 = vunpack.c.h.b16 %v120
    %v621 = vunpack.c.l.b16 %v121
    %v622 = vunpack.c.l.b16 %v122
    %v623 = vunpack.c.h.b16 %v122
    %v624 = vunpack.c.l.b16 %v123
    %v625 = vunpack.c.l.b16 %v124
    %v626 = vunpack.c.h.b16 %v124
    %v627 = vunpack.c.l.b16 %v125
    %v628 = vunpack.c.l.b16 %v126
    %v629 = vunpack.c.h.b16 %v126
    %v630 = vunpack.c.l.b16 %v127
    %v631 = vunpack.c.l.b16 %v128
    %v632 = vunpack.c.h.b16 %v128
    %v633 = vunpack.c.l.b16 %v129
    %v634 = vunpack.c.l.b16 %v130
    %v635 = vunpack.c.h.b16 %v130
    %v636 = vunpack.c.l.b16 %v131
    %v637 = vunpack.c.l.b16 %v132
    %v638 = vunpack.c.h.b16 %v132
    %v639 = vunpack.c.l.b16 %v133
    %v640 = vunpack.c.l.b16 %v134
    %v641 = vunpack.c.h.b16 %v134
    %v642 = vunpack.c.l.b16 %v135
    %v643 = vunpack.c.l.b16 %v136
    %v644 = vunpack.c.h.b16 %v136
    %v645 = vunpack.c.l.b16 %v137
    %v646 = vunpack.c.l.b16 %v138
    %v647 = vunpack.c.h.b16 %v138
    %v648 = vunpack.c.l.b16 %v139
    %v649 = vunpack.c.l.b16 %v140
    %v650 = vunpack.c.h.b16 %v140
    %v651 = vunpack.c.l.b16 %v141
    %v652 = vunpack.c.l.b16 %v142
    %v653 = vunpack.c.h.b16 %v142
    %v654 = vunpack.c.l.b16 %v143
    %v655 = vunpack.c.l.b16 %v144
    %v656 = vunpack.c.h.b16 %v144
    %v657 = vunpack.c.l.b16 %v145
    %v658 = vunpack.c.l.b16 %v146
    %v659 = vunpack.c.h.b16 %v146
    %v660 = vunpack.c.l.b16 %v147
    %v661 = vunpack.c.l.b16 %v148
    %v662 = vunpack.c.h.b16 %v148
    %v663 = vunpack.c.l.b16 %v149
    %v664 = vunpack.c.l.b16 %v150
    %v665 = vunpack.c.h.b16 %v150
    %v666 = vunpack.c.l.b16 %v151
    %v667 = vunpack.c.l.b16 %v152
    %v668 = vunpack.c.h.b16 %v152
    %v669 = vunpack.c.l.b16 %v153
    %v670 = vunpack.c.l.b16 %v154
    %v671 = vunpack.c.h.b16 %v154
    %v672 = vunpack.c.l.b16 %v155
    %v673 = vunpack.c.l.b16 %v156
    %v674 = vunpack.c.h.b16 %v156
    %v675 = vunpack.c.l.b16 %v157
    %v676 = vunpack.c.l.b16 %v158
    %v677 = vunpack.c.h.b16 %v158
    %v678 = vunpack.c.l.b16 %v159
    %v679 = vunpack.c.l.b16 %v160
    %v680 = vunpack.c.h.b16 %v160
    %v681 = vunpack.c.l.b16 %v161
    %v682 = vunpack.c.l.b16 %v162
    %v683 = vunpack.c.h.b16 %v162
    %v684 = vunpack.c.l.b16 %v163
    %v685 = vunpack.c.l.b16 %v164
    %v686 = vunpack.c.h.b16 %v164
    %v687 = vunpack.c.l.b16 %v165
    %v688 = vunpack.c.l.b16 %v166
    %v689 = vunpack.c.h.b16 %v166
    %v690 = vunpack.c.l.b16 %v167
    %v691 = vunpack.c.l.b16 %v168
    %v692 = vunpack.c.h.b16 %v168
    %v693 = vunpack.c.l.b16 %v169
    %v694 = vunpack.c.l.b16 %v170
    %v695 = vunpack.c.h.b16 %v170
    %v696 = vunpack.c.l.b16 %v171
    %v697 = vunpack.c.l.b16 %v172
    %v698 = vunpack.c.h.b16 %v172
    %v699 = vunpack.c.l.b16 %v173
    %v700 = vunpack.c.l.b16 %v174
    %v701 = vunpack.c.h.b16 %v174
    %v702 = vunpack.c.l.b16 %v175
    %v703 = vunpack.c.l.b16 %v176
    %v704 = vunpack.c.h.b16 %v176
    %v705 = vunpack.c.l.b16 %v177
    %v706 = vunpack.c.l.b16 %v178
    %v707 = vunpack.c.h.b16 %v178
    %v708 = vunpack.c.l.b16 %v179
    %v709 = vunpack.c.l.b16 %v180
    %v710 = vunpack.c.h.b16 %v180
    %v711 = vunpack.c.l.b16 %v181
    %v712 = vunpack.c.l.b16 %v182
    %v713 = vunpack.c.h.b16 %v182
    %v714 = vunpack.c.l.b16 %v183
    %v715 = vunpack.c.l.b16 %v184
    %v716 = vunpack.c.h.b16 %v184
    %v717 = vunpack.c.l.b16 %v185
    %v718 = vunpack.c.l.b16 %v186
    %v719 = vunpack.c.h.b16 %v186
    %v720 = vunpack.c.l.b16 %v187
    %v721 = vunpack.c.l.b16 %v188
    %v722 = vunpack.c.h.b16 %v188
    %v723 = vunpack.c.l.b16 %v189
    %v724 = vunpack.c.l.b16 %v190
    %v725 = vunpack.c.h.b16 %v190
    %v726 = vunpack.c.l.b16 %v191
    %v727 = vunpack.c.l.b16 %v192
    %v728 = vunpack.c.h.b16 %v192
    %v729 = vunpack.c.l.b16 %v193
    %v730 = vunpack.c.l.b16 %v194
    %v731 = vunpack.c.h.b16 %v194
    %v732 = vunpack.c.l.b16 %v195
    %v733 = vunpack.c.l.b16 %v196
    %v734 = vunpack.c.h.b16 %v196
    %v735 = vunpack.c.l.b16 %v197
    %v736 = vunpack.c.l.b16 %v198
    %v737 = vunpack.c.h.b16 %v198
    %v738 = vunpack.c.l.b16 %v199
    %v739 = vunpack.c.l.b16 %v200
    %v740 = vunpack.c.h.b16 %v200
    %v741 = vunpack.c.l.b16 %v201
    %v742 = vunpack.c.l.b16 %v202
    %v743 = vunpack.c.h.b16 %v202
    %v744 = vunpack.c.l.b16 %v203
    %v745 = vunpack.c.l.b16 %v204
    %v746 = vunpack.c.h.b16 %v204
    %v747 = vunpack.c.l.b16 %v205
    %v748 = vunpack.c.l.b16 %v206
    %v749 = vunpack.c.h.b16 %v206
    %v750 = vunpack.c.l.b16 %v207
    %v751 = vunpack.c.l.b16 %v208
    %v752 = vunpack.c.h.b16 %v208
    %v753 = vunpack.c.l.b16 %v209
    %v754 = vunpack.c.l.b16 %v210
    %v755 = vunpack.c.h.b16 %v210
    %v756 = vunpack.c.l.b16 %v211
    %v757 = vunpack.c.l.b16 %v212
    %v758 = vunpack.c.h.b16 %v212
    %v759 = vunpack.c.l.b16 %v213
    %v760 = vunpack.c.l.b16 %v214
    %v761 = vunpack.c.h.b16 %v214
    %v762 = vunpack.c.l.b16 %v215
    %v763 = vunpack.c.l.b16 %v216
    %v764 = vunpack.c.h.b16 %v216
    %v765 = vunpack.c.l.b16 %v217
    %v766 = vunpack.c.l.b16 %v218
    %v767 = vunpack.c.h.b16 %v218
    %v768 = vunpack.c.l.b16 %v219
    %v769 = vunpack.c.l.b16 %v220
    %v770 = vunpack.c.h.b16 %v220
    %v771 = vunpack.c.l.b16 %v221
    %v772 = vunpack.c.l.b16 %v222
    %v773 = vunpack.c.h.b16 %v222
    %v774 = vunpack.c.l.b16 %v223
    %v775 = vunpack.c.l.b16 %v224
    %v776 = vunpack.c.h.b16 %v224
    %v777 = vunpack.c.l.b16 %v225
    %v778 = vunpack.c.l.b16 %v226
    %v779 = vunpack.c.h.b16 %v226
    %v780 = vunpack.c.l.b16 %v227
    %v781 = vunpack.c.l.b16 %v228
    %v782 = vunpack.c.h.b16 %v228
    %v783 = vunpack.c.l.b16 %v229
    %v784 = vunpack.c.l.b16 %v230
    %v785 = vunpack.c.h.b16 %v230
    %v786 = vunpack.c.l.b16 %v231
    %v787 = vunpack.c.l.b16 %v232
    %v788 = vunpack.c.h.b16 %v232
    %v789 = vunpack.c.l.b16 %v233
    %v790 = vunpack.c.l.b16 %v234
    %v791 = vunpack.c.h.b16 %v234
    %v792 = vunpack.c.l.b16 %v235
    %v793 = vunpack.c.l.b16 %v236
    %v794 = vunpack.c.h.b16 %v236
    %v795 = vunpack.c.l.b16 %v237
    %v796 = vunpack.c.l.b16 %v238
    %v797 = vunpack.c.h.b16 %v238
    %v798 = vunpack.c.l.b16 %v239
    %v799 = vunpack.c.l.b16 %v240
    %v800 = vunpack.c.h.b16 %v240
    %v801 = vunpack.c.l.b16 %v241
    %v802 = vunpack.c.l.b16 %v242
    %v803 = vunpack.c.h.b16 %v242
    %v804 = vunpack.c.l.b16 %v243
    %v805 = vunpack.c.l.b16 %v244
    %v806 = vunpack.c.h.b16 %v244
    %v807 = vunpack.c.l.b16 %v245
    %v808 = vunpack.c.l.b16 %v246
    %v809 = vunpack.c.h.b16 %v246
    %v810 = vunpack.c.l.b16 %v247
    %v811 = vunpack.c.l.b16 %v248
    %v812 = vunpack.c.h.b16 %v248
    %v813 = vunpack.c.l.b16 %v249
    %v814 = vunpack.c.l.b16 %v250
    %v815 = vunpack.c.h.b16 %v250
    %v816 = vunpack.c.l.b16 %v251
    %v817 = vunpack.c.l.b16 %v252
    %v818 = vunpack.c.h.b16 %v252
    %v819 = vunpack.c.l.b16 %v253
    %v820 = vunpack.c.l.b16 %v254
    %v821 = vunpack.c.h.b16 %v254
    %v822 = vunpack.c.l.b16 %v255
    %v823 = vunpack.c.l.b16 %v256
    %v824 = vunpack.c.h.b16 %v256
    %v825 = vunpack.c.l.b16 %v257
    %v826 = vunpack.c.l.b16 %v258
    %v827 = vunpack.c.h.b16 %v258
    %v828 = vunpack.c.l.b16 %v259
    %v829 = vunpack.c.l.b16 %v260
    %v830 = vunpack.c.h.b16 %v260
    %v831 = vunpack.c.l.b16 %v261
    %v832 = vunpack.c.l.b16 %v262
    %v833 = vunpack.c.h.b16 %v262
    %v834 = vunpack.c.l.b16 %v263
    %v835 = vunpack.c.l.b16 %v264
    %v836 = vunpack.c.h.b16 %v264
    %v837 = vunpack.c.l.b16 %v265
    %v838 = vunpack.c.l.b16 %v266
    %v839 = vunpack.c.h.b16 %v266
    %v840 = vunpack.c.l.b16 %v267
    %v841 = vunpack.c.l.b16 %v268
    %v842 = vunpack.c.h.b16 %v268
    %v843 = vunpack.c.l.b16 %v269
    %v844 = vunpack.c.l.b16 %v270
    %v845 = vunpack.c.h.b16 %v270
    %v846 = vunpack.c.l.b16 %v271
    %v847 = vunpack.c.l.b16 %v272
    %v848 = vunpack.c.h.b16 %v272
    %v849 = vunpack.c.l.b16 %v273
    %v850 = vunpack.c.l.b16 %v274
    %v851 = vunpack.c.h.b16 %v274
    %v852 = vunpack.c.l.b16 %v275
    %v853 = vunpack.c.l.b16 %v276
    %v854 = vunpack.c.h.b16 %v276
    %v855 = vunpack.c.l.b16 %v277
    %v856 = vunpack.c.l.b16 %v278
    %v857 = vunpack.c.h.b16 %v278
    %v858 = vunpack.c.l.b16 %v279
    %v859 = vunpack.c.l.b16 %v280
    %v860 = vunpack.c.h.b16 %v280
    %v861 = vunpack.c.l.b16 %v281
    %v862 = vunpack.c.l.b16 %v282
    %v863 = vunpack.c.h.b16 %v282
    %v864 = vunpack.c.l.b16 %v283
    %v865 = vunpack.c.l.b16 %v284
    %v866 = vunpack.c.h.b16 %v284
    %v867 = vunpack.c.l.b16 %v285
    %v868 = vunpack.c.l.b16 %v286
    %v869 = vunpack.c.h.b16 %v286
    %v870 = vunpack.c.l.b16 %v287
    %v871 = vunpack.c.l.b16 %v288
    %v872 = vunpack.c.h.b16 %v288
    %v873 = vunpack.c.l.b16 %v289
    %v874 = vunpack.c.l.b16 %v290
    %v875 = vunpack.c.h.b16 %v290
    %v876 = vunpack.c.l.b16 %v291
    %v877 = vunpack.c.l.b16 %v292
    %v878 = vunpack.c.h.b16 %v292
    %v879 = vunpack.c.l.b16 %v293
    %v880 = vunpack.c.l.b16 %v294
    %v881 = vunpack.c.h.b16 %v294
    %v882 = vunpack.c.l.b16 %v295
    %v883 = vunpack.c.l.b16 %v296
    %v884 = vunpack.c.h.b16 %v296
    %v885 = vunpack.c.l.b16 %v297
    %v886 = vunpack.c.l.b16 %v298
    %v887 = vunpack.c.h.b16 %v298
    %v888 = vunpack.c.l.b16 %v299
    %v889 = vunpack.c.l.b16 %v300
    %v890 = vunpack.c.h.b16 %v300
    %v891 = vunpack.c.l.b16 %v301
    %v892 = vunpack.c.l.b16 %v302
    %v893 = vunpack.c.h.b16 %v302
    %v894 = vunpack.c.l.b16 %v303
    %v895 = vunpack.c.l.b16 %v304
    %v896 = vunpack.c.h.b16 %v304
    %v897 = vunpack.c.l.b16 %v305
    %v898 = vunpack.c.l.b16 %v306
    %v899 = vunpack.c.h.b16 %v306
    %v900 = vunpack.c.l.b16 %v307
    %v901 = vpack.c.b16 %v568, %v565
    %v902 = vpack.c.b16 %v569, %v566
    %v903 = vpack.c.b16 %v570, %v567
    %v904 = vpack.c.b16 %v574, %v571
    %v905 = vpack.c.b16 %v575, %v572
    %v906 = vpack.c.b16 %v576, %v573
    %v907 = vpack.c.b16 %v580, %v577
    %v908 = vpack.c.b16 %v581, %v578
    %v909 = vpack.c.b16 %v582, %v579
    %v910 = vpack.c.b16 %v586, %v583
    %v911 = vpack.c.b16 %v587, %v584
    %v912 = vpack.c.b16 %v588, %v585
    %v913 = vpack.c.b16 %v592, %v589
    %v914 = vpack.c.b16 %v593, %v590
    %v915 = vpack.c.b16 %v594, %v591
    %v916 = vpack.c.b16 %v598, %v595
    %v917 = vpack.c.b16 %v599, %v596
    %v918 = vpack.c.b16 %v600, %v597
    %v919 = vpack.c.b16 %v604, %v601
    %v920 = vpack.c.b16 %v605, %v602
    %v921 = vpack.c.b16 %v606, %v603
    %v922 = vpack.c.b16 %v610, %v607
    %v923 = vpack.c.b16 %v611, %v608
    %v924 = vpack.c.b16 %v612, %v609
    %v925 = vpack.c.b16 %v616, %v613
    %v926 = vpack.c.b16 %v617, %v614
    %v927 = vpack.c.b16 %v618, %v615
    %v928 = vpack.c.b16 %v622, %v619
    %v929 = vpack.c.b16 %v623, %v620
    %v930 = vpack.c.b16 %v624, %v621
    %v931 = vpack.c.b16 %v628, %v625
    %v932 = vpack.c.b16 %v629, %v626
    %v933 = vpack.c.b16 %v630, %v627
    %v934 = vpack.c.b16 %v634, %v631
    %v935 = vpack.c.b16 %v635, %v632
    %v936 = vpack.c.b16 %v636, %v633
    %v937 = vpack.c.b16 %v640, %v637
    %v938 = vpack.c.b16 %v641, %v638
    %v939 = vpack.c.b16 %v642, %v639
    %v940 = vpack.c.b16 %v646, %v643
    %v941 = vpack.c.b16 %v647, %v644
    %v942 = vpack.c.b16 %v648, %v645
    %v943 = vpack.c.b16 %v652, %v649
    %v944 = vpack.c.b16 %v653, %v650
    %v945 = vpack.c.b16 %v654, %v651
    %v946 = vpack.c.b16 %v658, %v655
    %v947 = vpack.c.b16 %v659, %v656
    %v948 = vpack.c.b16 %v660, %v657
    %v949 = vpack.c.b16 %v664, %v661
    %v950 = vpack.c.b16 %v665, %v662
    %v951 = vpack.c.b16 %v666, %v663
    %v952 = vpack.c.b16 %v670, %v667
    %v953 = vpack.c.b16 %v671, %v668
    %v954 = vpack.c.b16 %v672, %v669
    %v955 = vpack.c.b16 %v676, %v673
    %v956 = vpack.c.b16 %v677, %v674
    %v957 = vpack.c.b16 %v678, %v675
    %v958 = vpack.c.b16 %v682, %v679
    %v959 = vpack.c.b16 %v683, %v680
    %v960 = vpack.c.b16 %v684, %v681
    %v961 = vpack.c.b16 %v688, %v685
    %v962 = vpack.c.b16 %v689, %v686
    %v963 = vpack.c.b16 %v690, %v687
    %v964 = vpack.c.b16 %v694, %v691
    %v965 = vpack.c.b16 %v695, %v692
    %v966 = vpack.c.b16 %v696, %v693
    %v967 = vpack.c.b16 %v700, %v697
    %v968 = vpack.c.b16 %v701, %v698
    %v969 = vpack.c.b16 %v702, %v699
    %v970 = vpack.c.b16 %v706, %v703
    %v971 = vpack.c.b16 %v707, %v704
    %v972 = vpack.c.b16 %v708, %v705
    %v973 = vpack.c.b16 %v712, %v709
    %v974 = vpack.c.b16 %v713, %v710
    %v975 = vpack.c.b16 %v714, %v711
    %v976 = vpack.c.b16 %v718, %v715
    %v977 = vpack.c.b16 %v719, %v716
    %v978 = vpack.c.b16 %v720, %v717
    %v979 = vpack.c.b16 %v724, %v721
    %v980 = vpack.c.b16 %v725, %v722
    %v981 = vpack.c.b16 %v726, %v723
    %v982 = vpack.c.b16 %v730, %v727
    %v983 = vpack.c.b16 %v731, %v728
    %v984 = vpack.c.b16 %v732, %v729
    %v985 = vpack.c.b16 %v736, %v733
    %v986 = vpack.c.b16 %v737, %v734
    %v987 = vpack.c.b16 %v738, %v735
    %v988 = vpack.c.b16 %v742, %v739
    %v989 = vpack.c.b16 %v743, %v740
    %v990 = vpack.c.b16 %v744, %v741
    %v991 = vpack.c.b16 %v748, %v745
    %v992 = vpack.c.b16 %v749, %v746
    %v993 = vpack.c.b16 %v750, %v747
    %v994 = vpack.c.b16 %v754, %v751
    %v995 = vpack.c.b16 %v755, %v752
    %v996 = vpack.c.b16 %v756, %v753
    %v997 = vpack.c.b16 %v760, %v757
    %v998 = vpack.c.b16 %v761, %v758
    %v999 = vpack.c.b16 %v762, %v759
    %v1000 = vpack.c.b16 %v766, %v763
    %v1001 = vpack.c.b16 %v767, %v764
    %v1002 = vpack.c.b16 %v768, %v765
    %v1003 = vpack.c.b16 %v772, %v769
    %v1004 = vpack.c.b16 %v773, %v770
    %v1005 = vpack.c.b16 %v774, %v771
    %v1006 = vpack.c.b16 %v778, %v775
    %v1007 = vpack.c.b16 %v779, %v776
    %v1008 = vpack.c.b16 %v780, %v777
    %v1009 = vpack.c.b16 %v784, %v781
    %v1010 = vpack.c.b16 %v785, %v782
    %v1011 = vpack.c.b16 %v786, %v783
    %v1012 = vpack.c.b16 %v790, %v787
    %v1013 = vpack.c.b16 %v791, %v788
    %v1014 = vpack.c.b16 %v792, %v789
    %v1015 = vpack.c.b16 %v796, %v793
    %v1016 = vpack.c.b16 %v797, %v794
    %v1017 = vpack.c.b16 %v798, %v795
    %v1018 = vpack.c.b16 %v802, %v799
    %v1019 = vpack.c.b16 %v803, %v800
    %v1020 = vpack.c.b16 %v804, %v801
    %v1021 = vpack.c.b16 %v808, %v805
    %v1022 = vpack.c.b16 %v809, %v806
    %v1023 = vpack.c.b16 %v810, %v807
    %v1024 = vpack.c.b16 %v814, %v811
    %v1025 = vpack.c.b16 %v815, %v812
    %v1026 = vpack.c.b16 %v816, %v813
    %v1027 = vpack.c.b16 %v820, %v817
    %v1028 = vpack.c.b16 %v821, %v818
    %v1029 = vpack.c.b16 %v822, %v819
    %v1030 = vpack.c.b16 %v826, %v823
    %v1031 = vpack.c.b16 %v827, %v824
    %v1032 = vpack.c.b16 %v828, %v825
    %v1033 = vpack.c.b16 %v832, %v829
    %v1034 = vpack.c.b16 %v833, %v830
    %v1035 = vpack.c.b16 %v834, %v831
    %v1036 = vpack.c.b16 %v838, %v835
    %v1037 = vpack.c.b16 %v839, %v836
    %v1038 = vpack.c.b16 %v840, %v837
    %v1039 = vpack.c.b16 %v844, %v841
    %v1040 = vpack.c.b16 %v845, %v842
    %v1041 = vpack.c.b16 %v846, %v843
    %v1042 = vpack.c.b16 %v850, %v847
    %v1043 = vpack.c.b16 %v851, %v848
    %v1044 = vpack.c.b16 %v852, %v849
    %v1045 = vpack.c.b16 %v856, %v853
    %v1046 = vpack.c.b16 %v857, %v854
    %v1047 = vpack.c.b16 %v858, %v855
    %v1048 = vpack.c.b16 %v862, %v859
    %v1049 = vpack.c.b16 %v863, %v860
    %v1050 = vpack.c.b16 %v864, %v861
    %v1051 = vpack.c.b16 %v868, %v865
    %v1052 = vpack.c.b16 %v869, %v866
    %v1053 = vpack.c.b16 %v870, %v867
    %v1054 = vpack.c.b16 %v874, %v871
    %v1055 = vpack.c.b16 %v875, %v872
    %v1056 = vpack.c.b16 %v876, %v873
    %v1057 = vpack.c.b16 %v880, %v877
    %v1058 = vpack.c.b16 %v881, %v878
    %v1059 = vpack.c.b16 %v882, %v879
    %v1060 = vpack.c.b16 %v886, %v883
    %v1061 = vpack.c.b16 %v887, %v884
    %v1062 = vpack.c.b16 %v888, %v885
    %v1063 = vpack.c.b16 %v892, %v889
    %v1064 = vpack.c.b16 %v893, %v890
    %v1065 = vpack.c.b16 %v894, %v891
    %v1066 = vpack.c.b16 %v898, %v895
    %v1067 = vpack.c.b16 %v899, %v896
    %v1068 = vpack.c.b16 %v900, %v897
    %1237 = vmatpush.bf16.msra.mxu0 %v922
    %1238 = vmatpush.bf16.msra.mxu0 %v919
    %1239 = vmatpush.bf16.msra.mxu0 %v916
    %1240 = vmatpush.bf16.msra.mxu0 %v913
    %1241 = vmatpush.bf16.msra.mxu0 %v910
    %1242 = vmatpush.bf16.msra.mxu0 %v907
    %1243 = vmatpush.bf16.msra.mxu0 %v904
    %1244 = vmatpush.bf16.msra.mxu0 %v901
    %1245 = vmatmul.bf16.gmra.mxu0 %v327
    %v1246 = vpop.f32.mrf.mxu0
    %v1247 = vadd.f32 %v310, %v1246
    %v1248 = vpop.f32.mrf.mxu0
    %1249 = vdwg.mxu0
    %1250 = vmatpush.bf16.msra.mxu0 %v946
    %1251 = vmatpush.bf16.msra.mxu0 %v943
    %1252 = vmatpush.bf16.msra.mxu0 %v940
    %1253 = vmatpush.bf16.msra.mxu0 %v937
    %1254 = vmatpush.bf16.msra.mxu0 %v934
    %1255 = vmatpush.bf16.msra.mxu0 %v931
    %1256 = vmatpush.bf16.msra.mxu0 %v928
    %1257 = vmatpush.bf16.msra.mxu0 %v925
    %1258 = vmatmul.bf16.gmra.mxu0 %v328
    %v1259 = vpop.f32.mrf.mxu0
    %v1260 = vadd.f32 %v1247, %v1259
    %v1261 = vpop.f32.mrf.mxu0
    %1262 = vdwg.mxu0
    %1263 = vmatpush.bf16.msra.mxu0 %v970
    %1264 = vmatpush.bf16.msra.mxu0 %v967
    %1265 = vmatpush.bf16.msra.mxu0 %v964
    %1266 = vmatpush.bf16.msra.mxu0 %v961
    %1267 = vmatpush.bf16.msra.mxu0 %v958
    %1268 = vmatpush.bf16.msra.mxu0 %v955
    %1269 = vmatpush.bf16.msra.mxu0 %v952
    %1270 = vmatpush.bf16.msra.mxu0 %v949
    %1271 = vmatmul.bf16.gmra.mxu0 %v329
    %v1272 = vpop.f32.mrf.mxu0
    %v1273 = vadd.f32 %v1260, %v1272
    %v1274 = vpop.f32.mrf.mxu0
    %1275 = vdwg.mxu0
    %1276 = vmatpush.bf16.msra.mxu0 %v994
    %1277 = vmatpush.bf16.msra.mxu0 %v991
    %1278 = vmatpush.bf16.msra.mxu0 %v988
    %1279 = vmatpush.bf16.msra.mxu0 %v985
    %1280 = vmatpush.bf16.msra.mxu0 %v982
    %1281 = vmatpush.bf16.msra.mxu0 %v979
    %1282 = vmatpush.bf16.msra.mxu0 %v976
    %1283 = vmatpush.bf16.msra.mxu0 %v973
    %1284 = vmatmul.bf16.gmra.mxu0 %v330
    %v1285 = vpop.f32.mrf.mxu0
    %v1286 = vadd.f32 %v1273, %v1285
    %v1287 = vpop.f32.mrf.mxu0
    %1288 = vdwg.mxu0
    %1289 = vmatpush.bf16.msra.mxu0 %v1018
    %1290 = vmatpush.bf16.msra.mxu0 %v1015
    %1291 = vmatpush.bf16.msra.mxu0 %v1012
    %1292 = vmatpush.bf16.msra.mxu0 %v1009
    %1293 = vmatpush.bf16.msra.mxu0 %v1006
    %1294 = vmatpush.bf16.msra.mxu0 %v1003
    %1295 = vmatpush.bf16.msra.mxu0 %v1000
    %1296 = vmatpush.bf16.msra.mxu0 %v997
    %1297 = vmatmul.bf16.gmra.mxu0 %v331
    %v1298 = vpop.f32.mrf.mxu0
    %v1299 = vadd.f32 %v1286, %v1298
    %v1300 = vpop.f32.mrf.mxu0
    %1301 = vdwg.mxu0
    %1302 = vmatpush.bf16.msra.mxu0 %v1042
    %1303 = vmatpush.bf16.msra.mxu0 %v1039
    %1304 = vmatpush.bf16.msra.mxu0 %v1036
    %1305 = vmatpush.bf16.msra.mxu0 %v1033
    %1306 = vmatpush.bf16.msra.mxu0 %v1030
    %1307 = vmatpush.bf16.msra.mxu0 %v1027
    %1308 = vmatpush.bf16.msra.mxu0 %v1024
    %1309 = vmatpush.bf16.msra.mxu0 %v1021
    %1310 = vmatmul.bf16.gmra.mxu0 %v332
    %v1311 = vpop.f32.mrf.mxu0
    %v1312 = vadd.f32 %v1299, %v1311
    %v1313 = vpop.f32.mrf.mxu0
    %1314 = vdwg.mxu0
    %1315 = vmatpush.bf16.msra.mxu0 %v1066
    %1316 = vmatpush.bf16.msra.mxu0 %v1063
    %1317 = vmatpush.bf16.msra.mxu0 %v1060
    %1318 = vmatpush.bf16.msra.mxu0 %v1057
    %1319 = vmatpush.bf16.msra.mxu0 %v1054
    %1320 = vmatpush.bf16.msra.mxu0 %v1051
    %1321 = vmatpush.bf16.msra.mxu0 %v1048
    %1322 = vmatpush.bf16.msra.mxu0 %v1045
    %1323 = vmatmul.bf16.gmra.mxu0 %v333
    %v1324 = vpop.f32.mrf.mxu0
    %v1325 = vadd.f32 %v1312, %v1324
    %v1326 = vpop.f32.mrf.mxu0
    %1327 = vdwg.mxu0
    %1328 = vmatpush.bf16.msra.mxu0 %v923
    %1329 = vmatpush.bf16.msra.mxu0 %v920
    %1330 = vmatpush.bf16.msra.mxu0 %v917
    %1331 = vmatpush.bf16.msra.mxu0 %v914
    %1332 = vmatpush.bf16.msra.mxu0 %v911
    %1333 = vmatpush.bf16.msra.mxu0 %v908
    %1334 = vmatpush.bf16.msra.mxu0 %v905
    %1335 = vmatpush.bf16.msra.mxu0 %v902
    %1336 = vmatmul.bf16.gmra.mxu0 %v327
    %v1337 = vpop.f32.mrf.mxu0
    %v1338 = vadd.f32 %v311, %v1337
    %v1339 = vpop.f32.mrf.mxu0
    %1340 = vdwg.mxu0
    %1341 = vmatpush.bf16.msra.mxu0 %v947
    %1342 = vmatpush.bf16.msra.mxu0 %v944
    %1343 = vmatpush.bf16.msra.mxu0 %v941
    %1344 = vmatpush.bf16.msra.mxu0 %v938
    %1345 = vmatpush.bf16.msra.mxu0 %v935
    %1346 = vmatpush.bf16.msra.mxu0 %v932
    %1347 = vmatpush.bf16.msra.mxu0 %v929
    %1348 = vmatpush.bf16.msra.mxu0 %v926
    %1349 = vmatmul.bf16.gmra.mxu0 %v328
    %v1350 = vpop.f32.mrf.mxu0
    %v1351 = vadd.f32 %v1338, %v1350
    %v1352 = vpop.f32.mrf.mxu0
    %1353 = vdwg.mxu0
    %1354 = vmatpush.bf16.msra.mxu0 %v971
    %1355 = vmatpush.bf16.msra.mxu0 %v968
    %1356 = vmatpush.bf16.msra.mxu0 %v965
    %1357 = vmatpush.bf16.msra.mxu0 %v962
    %1358 = vmatpush.bf16.msra.mxu0 %v959
    %1359 = vmatpush.bf16.msra.mxu0 %v956
    %1360 = vmatpush.bf16.msra.mxu0 %v953
    %1361 = vmatpush.bf16.msra.mxu0 %v950
    %1362 = vmatmul.bf16.gmra.mxu0 %v329
    %v1363 = vpop.f32.mrf.mxu0
    %v1364 = vadd.f32 %v1351, %v1363
    %v1365 = vpop.f32.mrf.mxu0
    %1366 = vdwg.mxu0
    %1367 = vmatpush.bf16.msra.mxu0 %v995
    %1368 = vmatpush.bf16.msra.mxu0 %v992
    %1369 = vmatpush.bf16.msra.mxu0 %v989
    %1370 = vmatpush.bf16.msra.mxu0 %v986
    %1371 = vmatpush.bf16.msra.mxu0 %v983
    %1372 = vmatpush.bf16.msra.mxu0 %v980
    %1373 = vmatpush.bf16.msra.mxu0 %v977
    %1374 = vmatpush.bf16.msra.mxu0 %v974
    %1375 = vmatmul.bf16.gmra.mxu0 %v330
    %v1376 = vpop.f32.mrf.mxu0
    %v1377 = vadd.f32 %v1364, %v1376
    %v1378 = vpop.f32.mrf.mxu0
    %1379 = vdwg.mxu0
    %1380 = vmatpush.bf16.msra.mxu0 %v1019
    %1381 = vmatpush.bf16.msra.mxu0 %v1016
    %1382 = vmatpush.bf16.msra.mxu0 %v1013
    %1383 = vmatpush.bf16.msra.mxu0 %v1010
    %1384 = vmatpush.bf16.msra.mxu0 %v1007
    %1385 = vmatpush.bf16.msra.mxu0 %v1004
    %1386 = vmatpush.bf16.msra.mxu0 %v1001
    %1387 = vmatpush.bf16.msra.mxu0 %v998
    %1388 = vmatmul.bf16.gmra.mxu0 %v331
    %v1389 = vpop.f32.mrf.mxu0
    %v1390 = vadd.f32 %v1377, %v1389
    %v1391 = vpop.f32.mrf.mxu0
    %1392 = vdwg.mxu0
    %1393 = vmatpush.bf16.msra.mxu0 %v1043
    %1394 = vmatpush.bf16.msra.mxu0 %v1040
    %1395 = vmatpush.bf16.msra.mxu0 %v1037
    %1396 = vmatpush.bf16.msra.mxu0 %v1034
    %1397 = vmatpush.bf16.msra.mxu0 %v1031
    %1398 = vmatpush.bf16.msra.mxu0 %v1028
    %1399 = vmatpush.bf16.msra.mxu0 %v1025
    %1400 = vmatpush.bf16.msra.mxu0 %v1022
    %1401 = vmatmul.bf16.gmra.mxu0 %v332
    %v1402 = vpop.f32.mrf.mxu0
    %v1403 = vadd.f32 %v1390, %v1402
    %v1404 = vpop.f32.mrf.mxu0
    %1405 = vdwg.mxu0
    %1406 = vmatpush.bf16.msra.mxu0 %v1067
    %1407 = vmatpush.bf16.msra.mxu0 %v1064
    %1408 = vmatpush.bf16.msra.mxu0 %v1061
    %1409 = vmatpush.bf16.msra.mxu0 %v1058
    %1410 = vmatpush.bf16.msra.mxu0 %v1055
    %1411 = vmatpush.bf16.msra.mxu0 %v1052
    %1412 = vmatpush.bf16.msra.mxu0 %v1049
    %1413 = vmatpush.bf16.msra.mxu0 %v1046
    %1414 = vmatmul.bf16.gmra.mxu0 %v333
    %v1415 = vpop.f32.mrf.mxu0
    %v1416 = vadd.f32 %v1403, %v1415
    %v1417 = vpop.f32.mrf.mxu0
    %1418 = vdwg.mxu0
    %1419 = vmatpush.bf16.msra.mxu0 %v924
    %1420 = vmatpush.bf16.msra.mxu0 %v921
    %1421 = vmatpush.bf16.msra.mxu0 %v918
    %1422 = vmatpush.bf16.msra.mxu0 %v915
    %1423 = vmatpush.bf16.msra.mxu0 %v912
    %1424 = vmatpush.bf16.msra.mxu0 %v909
    %1425 = vmatpush.bf16.msra.mxu0 %v906
    %1426 = vmatpush.bf16.msra.mxu0 %v903
    %1427 = vmatmul.bf16.gmra.mxu0 %v327
    %v1428 = vpop.f32.mrf.mxu0
    %v1429 = vadd.f32 %v312, %v1428
    %v1430 = vpop.f32.mrf.mxu0
    %1431 = vdwg.mxu0
    %1432 = vmatpush.bf16.msra.mxu0 %v948
    %1433 = vmatpush.bf16.msra.mxu0 %v945
    %1434 = vmatpush.bf16.msra.mxu0 %v942
    %1435 = vmatpush.bf16.msra.mxu0 %v939
    %1436 = vmatpush.bf16.msra.mxu0 %v936
    %1437 = vmatpush.bf16.msra.mxu0 %v933
    %1438 = vmatpush.bf16.msra.mxu0 %v930
    %1439 = vmatpush.bf16.msra.mxu0 %v927
    %1440 = vmatmul.bf16.gmra.mxu0 %v328
    %v1441 = vpop.f32.mrf.mxu0
    %v1442 = vadd.f32 %v1429, %v1441
    %v1443 = vpop.f32.mrf.mxu0
    %1444 = vdwg.mxu0
    %1445 = vmatpush.bf16.msra.mxu0 %v972
    %1446 = vmatpush.bf16.msra.mxu0 %v969
    %1447 = vmatpush.bf16.msra.mxu0 %v966
    %1448 = vmatpush.bf16.msra.mxu0 %v963
    %1449 = vmatpush.bf16.msra.mxu0 %v960
    %1450 = vmatpush.bf16.msra.mxu0 %v957
    %1451 = vmatpush.bf16.msra.mxu0 %v954
    %1452 = vmatpush.bf16.msra.mxu0 %v951
    %1453 = vmatmul.bf16.gmra.mxu0 %v329
    %v1454 = vpop.f32.mrf.mxu0
    %v1455 = vadd.f32 %v1442, %v1454
    %v1456 = vpop.f32.mrf.mxu0
    %1457 = vdwg.mxu0
    %1458 = vmatpush.bf16.msra.mxu0 %v996
    %1459 = vmatpush.bf16.msra.mxu0 %v993
    %1460 = vmatpush.bf16.msra.mxu0 %v990
    %1461 = vmatpush.bf16.msra.mxu0 %v987
    %1462 = vmatpush.bf16.msra.mxu0 %v984
    %1463 = vmatpush.bf16.msra.mxu0 %v981
    %1464 = vmatpush.bf16.msra.mxu0 %v978
    %1465 = vmatpush.bf16.msra.mxu0 %v975
    %1466 = vmatmul.bf16.gmra.mxu0 %v330
    %v1467 = vpop.f32.mrf.mxu0
    %v1468 = vadd.f32 %v1455, %v1467
    %v1469 = vpop.f32.mrf.mxu0
    %1470 = vdwg.mxu0
    %1471 = vmatpush.bf16.msra.mxu0 %v1020
    %1472 = vmatpush.bf16.msra.mxu0 %v1017
    %1473 = vmatpush.bf16.msra.mxu0 %v1014
    %1474 = vmatpush.bf16.msra.mxu0 %v1011
    %1475 = vmatpush.bf16.msra.mxu0 %v1008
    %1476 = vmatpush.bf16.msra.mxu0 %v1005
    %1477 = vmatpush.bf16.msra.mxu0 %v1002
    %1478 = vmatpush.bf16.msra.mxu0 %v999
    %1479 = vmatmul.bf16.gmra.mxu0 %v331
    %v1480 = vpop.f32.mrf.mxu0
    %v1481 = vadd.f32 %v1468, %v1480
    %v1482 = vpop.f32.mrf.mxu0
    %1483 = vdwg.mxu0
    %1484 = vmatpush.bf16.msra.mxu0 %v1044
    %1485 = vmatpush.bf16.msra.mxu0 %v1041
    %1486 = vmatpush.bf16.msra.mxu0 %v1038
    %1487 = vmatpush.bf16.msra.mxu0 %v1035
    %1488 = vmatpush.bf16.msra.mxu0 %v1032
    %1489 = vmatpush.bf16.msra.mxu0 %v1029
    %1490 = vmatpush.bf16.msra.mxu0 %v1026
    %1491 = vmatpush.bf16.msra.mxu0 %v1023
    %1492 = vmatmul.bf16.gmra.mxu0 %v332
    %v1493 = vpop.f32.mrf.mxu0
    %v1494 = vadd.f32 %v1481, %v1493
    %v1495 = vpop.f32.mrf.mxu0
    %1496 = vdwg.mxu0
    %1497 = vmatpush.bf16.msra.mxu0 %v1068
    %1498 = vmatpush.bf16.msra.mxu0 %v1065
    %1499 = vmatpush.bf16.msra.mxu0 %v1062
    %1500 = vmatpush.bf16.msra.mxu0 %v1059
    %1501 = vmatpush.bf16.msra.mxu0 %v1056
    %1502 = vmatpush.bf16.msra.mxu0 %v1053
    %1503 = vmatpush.bf16.msra.mxu0 %v1050
    %1504 = vmatpush.bf16.msra.mxu0 %v1047
    %1505 = vmatmul.bf16.gmra.mxu0 %v333
    %v1506 = vpop.f32.mrf.mxu0
    %v1507 = vadd.f32 %v1494, %v1506
    %v1508 = vpop.f32.mrf.mxu0
    %1509 = vdwg.mxu0
    %v1510 = vmax.f32 %v1325, 0.0
    %v1511 = vmax.f32 %v1416, 0.0
    %v1512 = vmax.f32 %v1507, 0.0
    %v1513 = vpack.c.bf16 %v1510, %v1510
    %v1514 = vpack.c.bf16 %v1511, %v1511
    %v1515 = vpack.c.bf16 %v1512, %v1512
    %v1516 = vld [vmem:[#allocation8] sm:$0xff]
    %v1517 = vld [vmem:[#allocation8 + $0x8] sm:$0xf]
    %v1518 = vld [vmem:[#allocation8 + $0xc] sm:$0xff]
    %v1519 = vld [vmem:[#allocation8 + $0x14] sm:$0xf]
    %v1520 = vld [vmem:[#allocation8 + $0x18] sm:$0xff]
    %v1521 = vld [vmem:[#allocation8 + $0x20] sm:$0xf]
    %v1522 = vld [vmem:[#allocation8 + $0x24] sm:$0xff]
    %v1523 = vld [vmem:[#allocation8 + $0x2c] sm:$0xf]
    %v1524 = vld [vmem:[#allocation8 + $0x30] sm:$0xff]
    %v1525 = vld [vmem:[#allocation8 + $0x38] sm:$0xf]
    %v1526 = vld [vmem:[#allocation8 + $0x3c] sm:$0xff]
    %v1527 = vld [vmem:[#allocation8 + $0x44] sm:$0xf]
    %v1528 = vld [vmem:[#allocation8 + $0x48] sm:$0xff]
    %v1529 = vld [vmem:[#allocation8 + $0x50] sm:$0xf]
    %v1530 = vld [vmem:[#allocation8 + $0x54] sm:$0xff]
    %v1531 = vld [vmem:[#allocation8 + $0x5c] sm:$0xf]
    %v1532 = vld [vmem:[#allocation8 + $0x60] sm:$0xff]
    %v1533 = vld [vmem:[#allocation8 + $0x68] sm:$0xf]
    %v1534 = vld [vmem:[#allocation8 + $0x6c] sm:$0xff]
    %v1535 = vld [vmem:[#allocation8 + $0x74] sm:$0xf]
    %v1536 = vld [vmem:[#allocation8 + $0x78] sm:$0xff]
    %v1537 = vld [vmem:[#allocation8 + $0x80] sm:$0xf]
    %v1538 = vld [vmem:[#allocation8 + $0x84] sm:$0xff]
    %v1539 = vld [vmem:[#allocation8 + $0x8c] sm:$0xf]
    %v1540 = vld [vmem:[#allocation8 + $0x90] sm:$0xff]
    %v1541 = vld [vmem:[#allocation8 + $0x98] sm:$0xf]
    %v1542 = vld [vmem:[#allocation8 + $0x9c] sm:$0xff]
    %v1543 = vld [vmem:[#allocation8 + $0xa4] sm:$0xf]
    %v1544 = vld [vmem:[#allocation8 + $0xa8] sm:$0xff]
    %v1545 = vld [vmem:[#allocation8 + $0xb0] sm:$0xf]
    %v1546 = vld [vmem:[#allocation8 + $0xb4] sm:$0xff]
    %v1547 = vld [vmem:[#allocation8 + $0xbc] sm:$0xf]
    %v1548 = vld [vmem:[#allocation8 + $0xc0] sm:$0xff]
    %v1549 = vld [vmem:[#allocation8 + $0xc8] sm:$0xf]
    %v1550 = vld [vmem:[#allocation8 + $0xcc] sm:$0xff]
    %v1551 = vld [vmem:[#allocation8 + $0xd4] sm:$0xf]
    %v1552 = vld [vmem:[#allocation8 + $0xd8] sm:$0xff]
    %v1553 = vld [vmem:[#allocation8 + $0xe0] sm:$0xf]
    %v1554 = vld [vmem:[#allocation8 + $0xe4] sm:$0xff]
    %v1555 = vld [vmem:[#allocation8 + $0xec] sm:$0xf]
    %v1556 = vld [vmem:[#allocation8 + $0xf0] sm:$0xff]
    %v1557 = vld [vmem:[#allocation8 + $0xf8] sm:$0xf]
    %v1558 = vld [vmem:[#allocation8 + $0xfc] sm:$0xff]
    %v1559 = vld [vmem:[#allocation8 + $0x104] sm:$0xf]
    %v1560 = vld [vmem:[#allocation8 + $0x108] sm:$0xff]
    %v1561 = vld [vmem:[#allocation8 + $0x110] sm:$0xf]
    %v1562 = vld [vmem:[#allocation8 + $0x114] sm:$0xff]
    %v1563 = vld [vmem:[#allocation8 + $0x11c] sm:$0xf]
    %v1564 = vld [vmem:[#allocation8 + $0x120] sm:$0xff]
    %v1565 = vld [vmem:[#allocation8 + $0x128] sm:$0xf]
    %v1566 = vld [vmem:[#allocation8 + $0x12c] sm:$0xff]
    %v1567 = vld [vmem:[#allocation8 + $0x134] sm:$0xf]
    %v1568 = vld [vmem:[#allocation8 + $0x138] sm:$0xff]
    %v1569 = vld [vmem:[#allocation8 + $0x140] sm:$0xf]
    %v1570 = vld [vmem:[#allocation8 + $0x144] sm:$0xff]
    %v1571 = vld [vmem:[#allocation8 + $0x14c] sm:$0xf]
    %v1572 = vld [vmem:[#allocation8 + $0x150] sm:$0xff]
    %v1573 = vld [vmem:[#allocation8 + $0x158] sm:$0xf]
    %v1574 = vld [vmem:[#allocation8 + $0x15c] sm:$0xff]
    %v1575 = vld [vmem:[#allocation8 + $0x164] sm:$0xf]
    %v1576 = vld [vmem:[#allocation8 + $0x168] sm:$0xff]
    %v1577 = vld [vmem:[#allocation8 + $0x170] sm:$0xf]
    %v1578 = vld [vmem:[#allocation8 + $0x174] sm:$0xff]
    %v1579 = vld [vmem:[#allocation8 + $0x17c] sm:$0xf]
    %v1580 = vld [vmem:[#allocation8 + $0x180] sm:$0xff]
    %v1581 = vld [vmem:[#allocation8 + $0x188] sm:$0xf]
    %v1582 = vld [vmem:[#allocation8 + $0x18c] sm:$0xff]
    %v1583 = vld [vmem:[#allocation8 + $0x194] sm:$0xf]
    %v1584 = vld [vmem:[#allocation8 + $0x198] sm:$0xff]
    %v1585 = vld [vmem:[#allocation8 + $0x1a0] sm:$0xf]
    %v1586 = vld [vmem:[#allocation8 + $0x1a4] sm:$0xff]
    %v1587 = vld [vmem:[#allocation8 + $0x1ac] sm:$0xf]
    %v1588 = vld [vmem:[#allocation8 + $0x1b0] sm:$0xff]
    %v1589 = vld [vmem:[#allocation8 + $0x1b8] sm:$0xf]
    %v1590 = vld [vmem:[#allocation8 + $0x1bc] sm:$0xff]
    %v1591 = vld [vmem:[#allocation8 + $0x1c4] sm:$0xf]
    %v1592 = vld [vmem:[#allocation8 + $0x1c8] sm:$0xff]
    %v1593 = vld [vmem:[#allocation8 + $0x1d0] sm:$0xf]
    %v1594 = vld [vmem:[#allocation8 + $0x1d4] sm:$0xff]
    %v1595 = vld [vmem:[#allocation8 + $0x1dc] sm:$0xf]
    %v1596 = vld [vmem:[#allocation8 + $0x1e0] sm:$0xff]
    %v1597 = vld [vmem:[#allocation8 + $0x1e8] sm:$0xf]
    %v1598 = vld [vmem:[#allocation8 + $0x1ec] sm:$0xff]
    %v1599 = vld [vmem:[#allocation8 + $0x1f4] sm:$0xf]
    %v1600 = vld [vmem:[#allocation8 + $0x1f8] sm:$0xff]
    %v1601 = vld [vmem:[#allocation8 + $0x200] sm:$0xf]
    %v1602 = vld [vmem:[#allocation8 + $0x204] sm:$0xff]
    %v1603 = vld [vmem:[#allocation8 + $0x20c] sm:$0xf]
    %v1604 = vld [vmem:[#allocation8 + $0x210] sm:$0xff]
    %v1605 = vld [vmem:[#allocation8 + $0x218] sm:$0xf]
    %v1606 = vld [vmem:[#allocation8 + $0x21c] sm:$0xff]
    %v1607 = vld [vmem:[#allocation8 + $0x224] sm:$0xf]
    %v1608 = vld [vmem:[#allocation8 + $0x228] sm:$0xff]
    %v1609 = vld [vmem:[#allocation8 + $0x230] sm:$0xf]
    %v1610 = vld [vmem:[#allocation8 + $0x234] sm:$0xff]
    %v1611 = vld [vmem:[#allocation8 + $0x23c] sm:$0xf]
    %v1612 = vld [vmem:[%s4] sm:$0x7]
    %v1614 = vperm.slane %v1612, 0
    %v1615 = vperm.slane %v1612, 1
    %v1616 = vperm.slane %v1612, 2
    %v1716 = vunpack.c.l.b16 %v1516
    %v1717 = vunpack.c.h.b16 %v1516
    %v1718 = vunpack.c.l.b16 %v1517
    %v1719 = vunpack.c.l.b16 %v1518
    %v1720 = vunpack.c.h.b16 %v1518
    %v1721 = vunpack.c.l.b16 %v1519
    %v1722 = vunpack.c.l.b16 %v1520
    %v1723 = vunpack.c.h.b16 %v1520
    %v1724 = vunpack.c.l.b16 %v1521
    %v1725 = vunpack.c.l.b16 %v1522
    %v1726 = vunpack.c.h.b16 %v1522
    %v1727 = vunpack.c.l.b16 %v1523
    %v1728 = vunpack.c.l.b16 %v1524
    %v1729 = vunpack.c.h.b16 %v1524
    %v1730 = vunpack.c.l.b16 %v1525
    %v1731 = vunpack.c.l.b16 %v1526
    %v1732 = vunpack.c.h.b16 %v1526
    %v1733 = vunpack.c.l.b16 %v1527
    %v1734 = vunpack.c.l.b16 %v1528
    %v1735 = vunpack.c.h.b16 %v1528
    %v1736 = vunpack.c.l.b16 %v1529
    %v1737 = vunpack.c.l.b16 %v1530
    %v1738 = vunpack.c.h.b16 %v1530
    %v1739 = vunpack.c.l.b16 %v1531
    %v1740 = vunpack.c.l.b16 %v1532
    %v1741 = vunpack.c.h.b16 %v1532
    %v1742 = vunpack.c.l.b16 %v1533
    %v1743 = vunpack.c.l.b16 %v1534
    %v1744 = vunpack.c.h.b16 %v1534
    %v1745 = vunpack.c.l.b16 %v1535
    %v1746 = vunpack.c.l.b16 %v1536
    %v1747 = vunpack.c.h.b16 %v1536
    %v1748 = vunpack.c.l.b16 %v1537
    %v1749 = vunpack.c.l.b16 %v1538
    %v1750 = vunpack.c.h.b16 %v1538
    %v1751 = vunpack.c.l.b16 %v1539
    %v1752 = vunpack.c.l.b16 %v1540
    %v1753 = vunpack.c.h.b16 %v1540
    %v1754 = vunpack.c.l.b16 %v1541
    %v1755 = vunpack.c.l.b16 %v1542
    %v1756 = vunpack.c.h.b16 %v1542
    %v1757 = vunpack.c.l.b16 %v1543
    %v1758 = vunpack.c.l.b16 %v1544
    %v1759 = vunpack.c.h.b16 %v1544
    %v1760 = vunpack.c.l.b16 %v1545
    %v1761 = vunpack.c.l.b16 %v1546
    %v1762 = vunpack.c.h.b16 %v1546
    %v1763 = vunpack.c.l.b16 %v1547
    %v1764 = vunpack.c.l.b16 %v1548
    %v1765 = vunpack.c.h.b16 %v1548
    %v1766 = vunpack.c.l.b16 %v1549
    %v1767 = vunpack.c.l.b16 %v1550
    %v1768 = vunpack.c.h.b16 %v1550
    %v1769 = vunpack.c.l.b16 %v1551
    %v1770 = vunpack.c.l.b16 %v1552
    %v1771 = vunpack.c.h.b16 %v1552
    %v1772 = vunpack.c.l.b16 %v1553
    %v1773 = vunpack.c.l.b16 %v1554
    %v1774 = vunpack.c.h.b16 %v1554
    %v1775 = vunpack.c.l.b16 %v1555
    %v1776 = vunpack.c.l.b16 %v1556
    %v1777 = vunpack.c.h.b16 %v1556
    %v1778 = vunpack.c.l.b16 %v1557
    %v1779 = vunpack.c.l.b16 %v1558
    %v1780 = vunpack.c.h.b16 %v1558
    %v1781 = vunpack.c.l.b16 %v1559
    %v1782 = vunpack.c.l.b16 %v1560
    %v1783 = vunpack.c.h.b16 %v1560
    %v1784 = vunpack.c.l.b16 %v1561
    %v1785 = vunpack.c.l.b16 %v1562
    %v1786 = vunpack.c.h.b16 %v1562
    %v1787 = vunpack.c.l.b16 %v1563
    %v1788 = vunpack.c.l.b16 %v1564
    %v1789 = vunpack.c.h.b16 %v1564
    %v1790 = vunpack.c.l.b16 %v1565
    %v1791 = vunpack.c.l.b16 %v1566
    %v1792 = vunpack.c.h.b16 %v1566
    %v1793 = vunpack.c.l.b16 %v1567
    %v1794 = vunpack.c.l.b16 %v1568
    %v1795 = vunpack.c.h.b16 %v1568
    %v1796 = vunpack.c.l.b16 %v1569
    %v1797 = vunpack.c.l.b16 %v1570
    %v1798 = vunpack.c.h.b16 %v1570
    %v1799 = vunpack.c.l.b16 %v1571
    %v1800 = vunpack.c.l.b16 %v1572
    %v1801 = vunpack.c.h.b16 %v1572
    %v1802 = vunpack.c.l.b16 %v1573
    %v1803 = vunpack.c.l.b16 %v1574
    %v1804 = vunpack.c.h.b16 %v1574
    %v1805 = vunpack.c.l.b16 %v1575
    %v1806 = vunpack.c.l.b16 %v1576
    %v1807 = vunpack.c.h.b16 %v1576
    %v1808 = vunpack.c.l.b16 %v1577
    %v1809 = vunpack.c.l.b16 %v1578
    %v1810 = vunpack.c.h.b16 %v1578
    %v1811 = vunpack.c.l.b16 %v1579
    %v1812 = vunpack.c.l.b16 %v1580
    %v1813 = vunpack.c.h.b16 %v1580
    %v1814 = vunpack.c.l.b16 %v1581
    %v1815 = vunpack.c.l.b16 %v1582
    %v1816 = vunpack.c.h.b16 %v1582
    %v1817 = vunpack.c.l.b16 %v1583
    %v1818 = vunpack.c.l.b16 %v1584
    %v1819 = vunpack.c.h.b16 %v1584
    %v1820 = vunpack.c.l.b16 %v1585
    %v1821 = vunpack.c.l.b16 %v1586
    %v1822 = vunpack.c.h.b16 %v1586
    %v1823 = vunpack.c.l.b16 %v1587
    %v1824 = vunpack.c.l.b16 %v1588
    %v1825 = vunpack.c.h.b16 %v1588
    %v1826 = vunpack.c.l.b16 %v1589
    %v1827 = vunpack.c.l.b16 %v1590
    %v1828 = vunpack.c.h.b16 %v1590
    %v1829 = vunpack.c.l.b16 %v1591
    %v1830 = vunpack.c.l.b16 %v1592
    %v1831 = vunpack.c.h.b16 %v1592
    %v1832 = vunpack.c.l.b16 %v1593
    %v1833 = vunpack.c.l.b16 %v1594
    %v1834 = vunpack.c.h.b16 %v1594
    %v1835 = vunpack.c.l.b16 %v1595
    %v1836 = vunpack.c.l.b16 %v1596
    %v1837 = vunpack.c.h.b16 %v1596
    %v1838 = vunpack.c.l.b16 %v1597
    %v1839 = vunpack.c.l.b16 %v1598
    %v1840 = vunpack.c.h.b16 %v1598
    %v1841 = vunpack.c.l.b16 %v1599
    %v1842 = vunpack.c.l.b16 %v1600
    %v1843 = vunpack.c.h.b16 %v1600
    %v1844 = vunpack.c.l.b16 %v1601
    %v1845 = vunpack.c.l.b16 %v1602
    %v1846 = vunpack.c.h.b16 %v1602
    %v1847 = vunpack.c.l.b16 %v1603
    %v1848 = vunpack.c.l.b16 %v1604
    %v1849 = vunpack.c.h.b16 %v1604
    %v1850 = vunpack.c.l.b16 %v1605
    %v1851 = vunpack.c.l.b16 %v1606
    %v1852 = vunpack.c.h.b16 %v1606
    %v1853 = vunpack.c.l.b16 %v1607
    %v1854 = vunpack.c.l.b16 %v1608
    %v1855 = vunpack.c.h.b16 %v1608
    %v1856 = vunpack.c.l.b16 %v1609
    %v1857 = vunpack.c.l.b16 %v1610
    %v1858 = vunpack.c.h.b16 %v1610
    %v1859 = vunpack.c.l.b16 %v1611
    %v1860 = vpack.c.b16 %v1719, %v1716
    %v1861 = vpack.c.b16 %v1720, %v1717
    %v1862 = vpack.c.b16 %v1721, %v1718
    %v1863 = vpack.c.b16 %v1725, %v1722
    %v1864 = vpack.c.b16 %v1726, %v1723
    %v1865 = vpack.c.b16 %v1727, %v1724
    %v1866 = vpack.c.b16 %v1731, %v1728
    %v1867 = vpack.c.b16 %v1732, %v1729
    %v1868 = vpack.c.b16 %v1733, %v1730
    %v1869 = vpack.c.b16 %v1737, %v1734
    %v1870 = vpack.c.b16 %v1738, %v1735
    %v1871 = vpack.c.b16 %v1739, %v1736
    %v1872 = vpack.c.b16 %v1743, %v1740
    %v1873 = vpack.c.b16 %v1744, %v1741
    %v1874 = vpack.c.b16 %v1745, %v1742
    %v1875 = vpack.c.b16 %v1749, %v1746
    %v1876 = vpack.c.b16 %v1750, %v1747
    %v1877 = vpack.c.b16 %v1751, %v1748
    %v1878 = vpack.c.b16 %v1755, %v1752
    %v1879 = vpack.c.b16 %v1756, %v1753
    %v1880 = vpack.c.b16 %v1757, %v1754
    %v1881 = vpack.c.b16 %v1761, %v1758
    %v1882 = vpack.c.b16 %v1762, %v1759
    %v1883 = vpack.c.b16 %v1763, %v1760
    %v1884 = vpack.c.b16 %v1767, %v1764
    %v1885 = vpack.c.b16 %v1768, %v1765
    %v1886 = vpack.c.b16 %v1769, %v1766
    %v1887 = vpack.c.b16 %v1773, %v1770
    %v1888 = vpack.c.b16 %v1774, %v1771
    %v1889 = vpack.c.b16 %v1775, %v1772
    %v1890 = vpack.c.b16 %v1779, %v1776
    %v1891 = vpack.c.b16 %v1780, %v1777
    %v1892 = vpack.c.b16 %v1781, %v1778
    %v1893 = vpack.c.b16 %v1785, %v1782
    %v1894 = vpack.c.b16 %v1786, %v1783
    %v1895 = vpack.c.b16 %v1787, %v1784
    %v1896 = vpack.c.b16 %v1791, %v1788
    %v1897 = vpack.c.b16 %v1792, %v1789
    %v1898 = vpack.c.b16 %v1793, %v1790
    %v1899 = vpack.c.b16 %v1797, %v1794
    %v1900 = vpack.c.b16 %v1798, %v1795
    %v1901 = vpack.c.b16 %v1799, %v1796
    %v1902 = vpack.c.b16 %v1803, %v1800
    %v1903 = vpack.c.b16 %v1804, %v1801
    %v1904 = vpack.c.b16 %v1805, %v1802
    %v1905 = vpack.c.b16 %v1809, %v1806
    %v1906 = vpack.c.b16 %v1810, %v1807
    %v1907 = vpack.c.b16 %v1811, %v1808
    %v1908 = vpack.c.b16 %v1815, %v1812
    %v1909 = vpack.c.b16 %v1816, %v1813
    %v1910 = vpack.c.b16 %v1817, %v1814
    %v1911 = vpack.c.b16 %v1821, %v1818
    %v1912 = vpack.c.b16 %v1822, %v1819
    %v1913 = vpack.c.b16 %v1823, %v1820
    %v1914 = vpack.c.b16 %v1827, %v1824
    %v1915 = vpack.c.b16 %v1828, %v1825
    %v1916 = vpack.c.b16 %v1829, %v1826
    %v1917 = vpack.c.b16 %v1833, %v1830
    %v1918 = vpack.c.b16 %v1834, %v1831
    %v1919 = vpack.c.b16 %v1835, %v1832
    %v1920 = vpack.c.b16 %v1839, %v1836
    %v1921 = vpack.c.b16 %v1840, %v1837
    %v1922 = vpack.c.b16 %v1841, %v1838
    %v1923 = vpack.c.b16 %v1845, %v1842
    %v1924 = vpack.c.b16 %v1846, %v1843
    %v1925 = vpack.c.b16 %v1847, %v1844
    %v1926 = vpack.c.b16 %v1851, %v1848
    %v1927 = vpack.c.b16 %v1852, %v1849
    %v1928 = vpack.c.b16 %v1853, %v1850
    %v1929 = vpack.c.b16 %v1857, %v1854
    %v1930 = vpack.c.b16 %v1858, %v1855
    %v1931 = vpack.c.b16 %v1859, %v1856
    %2004 = vmatpush.bf16.msra.mxu0 %v1881
    %2005 = vmatpush.bf16.msra.mxu0 %v1878
    %2006 = vmatpush.bf16.msra.mxu0 %v1875
    %2007 = vmatpush.bf16.msra.mxu0 %v1872
    %2008 = vmatpush.bf16.msra.mxu0 %v1869
    %2009 = vmatpush.bf16.msra.mxu0 %v1866
    %2010 = vmatpush.bf16.msra.mxu0 %v1863
    %2011 = vmatpush.bf16.msra.mxu0 %v1860
    %2012 = vmatmul.bf16.gmra.mxu0 %v1513
    %v2013 = vpop.f32.mrf.mxu0
    %v2014 = vadd.f32 %v1614, %v2013
    %v2015 = vpop.f32.mrf.mxu0
    %2016 = vdwg.mxu0
    %2017 = vmatpush.bf16.msra.mxu0 %v1905
    %2018 = vmatpush.bf16.msra.mxu0 %v1902
    %2019 = vmatpush.bf16.msra.mxu0 %v1899
    %2020 = vmatpush.bf16.msra.mxu0 %v1896
    %2021 = vmatpush.bf16.msra.mxu0 %v1893
    %2022 = vmatpush.bf16.msra.mxu0 %v1890
    %2023 = vmatpush.bf16.msra.mxu0 %v1887
    %2024 = vmatpush.bf16.msra.mxu0 %v1884
    %2025 = vmatmul.bf16.gmra.mxu0 %v1514
    %v2026 = vpop.f32.mrf.mxu0
    %v2027 = vadd.f32 %v2014, %v2026
    %v2028 = vpop.f32.mrf.mxu0
    %2029 = vdwg.mxu0
    %2030 = vmatpush.bf16.msra.mxu0 %v1929
    %2031 = vmatpush.bf16.msra.mxu0 %v1926
    %2032 = vmatpush.bf16.msra.mxu0 %v1923
    %2033 = vmatpush.bf16.msra.mxu0 %v1920
    %2034 = vmatpush.bf16.msra.mxu0 %v1917
    %2035 = vmatpush.bf16.msra.mxu0 %v1914
    %2036 = vmatpush.bf16.msra.mxu0 %v1911
    %2037 = vmatpush.bf16.msra.mxu0 %v1908
    %2038 = vmatmul.bf16.gmra.mxu0 %v1515
    %v2039 = vpop.f32.mrf.mxu0
    %v2040 = vadd.f32 %v2027, %v2039
    %v2041 = vpop.f32.mrf.mxu0
    %2042 = vdwg.mxu0
    %2043 = vmatpush.bf16.msra.mxu0 %v1882
    %2044 = vmatpush.bf16.msra.mxu0 %v1879
    %2045 = vmatpush.bf16.msra.mxu0 %v1876
    %2046 = vmatpush.bf16.msra.mxu0 %v1873
    %2047 = vmatpush.bf16.msra.mxu0 %v1870
    %2048 = vmatpush.bf16.msra.mxu0 %v1867
    %2049 = vmatpush.bf16.msra.mxu0 %v1864
    %2050 = vmatpush.bf16.msra.mxu0 %v1861
    %2051 = vmatmul.bf16.gmra.mxu0 %v1513
    %v2052 = vpop.f32.mrf.mxu0
    %v2053 = vadd.f32 %v1615, %v2052
    %v2054 = vpop.f32.mrf.mxu0
    %2055 = vdwg.mxu0
    %2056 = vmatpush.bf16.msra.mxu0 %v1906
    %2057 = vmatpush.bf16.msra.mxu0 %v1903
    %2058 = vmatpush.bf16.msra.mxu0 %v1900
    %2059 = vmatpush.bf16.msra.mxu0 %v1897
    %2060 = vmatpush.bf16.msra.mxu0 %v1894
    %2061 = vmatpush.bf16.msra.mxu0 %v1891
    %2062 = vmatpush.bf16.msra.mxu0 %v1888
    %2063 = vmatpush.bf16.msra.mxu0 %v1885
    %2064 = vmatmul.bf16.gmra.mxu0 %v1514
    %v2065 = vpop.f32.mrf.mxu0
    %v2066 = vadd.f32 %v2053, %v2065
    %v2067 = vpop.f32.mrf.mxu0
    %2068 = vdwg.mxu0
    %2069 = vmatpush.bf16.msra.mxu0 %v1930
    %2070 = vmatpush.bf16.msra.mxu0 %v1927
    %2071 = vmatpush.bf16.msra.mxu0 %v1924
    %2072 = vmatpush.bf16.msra.mxu0 %v1921
    %2073 = vmatpush.bf16.msra.mxu0 %v1918
    %2074 = vmatpush.bf16.msra.mxu0 %v1915
    %2075 = vmatpush.bf16.msra.mxu0 %v1912
    %2076 = vmatpush.bf16.msra.mxu0 %v1909
    %2077 = vmatmul.bf16.gmra.mxu0 %v1515
    %v2078 = vpop.f32.mrf.mxu0
    %v2079 = vadd.f32 %v2066, %v2078
    %v2080 = vpop.f32.mrf.mxu0
    %2081 = vdwg.mxu0
    %2082 = vmatpush.bf16.msra.mxu0 %v1883
    %2083 = vmatpush.bf16.msra.mxu0 %v1880
    %2084 = vmatpush.bf16.msra.mxu0 %v1877
    %2085 = vmatpush.bf16.msra.mxu0 %v1874
    %2086 = vmatpush.bf16.msra.mxu0 %v1871
    %2087 = vmatpush.bf16.msra.mxu0 %v1868
    %2088 = vmatpush.bf16.msra.mxu0 %v1865
    %2089 = vmatpush.bf16.msra.mxu0 %v1862
    %2090 = vmatmul.bf16.gmra.mxu0 %v1513
    %v2091 = vpop.f32.mrf.mxu0
    %v2092 = vadd.f32 %v1616, %v2091
    %v2093 = vpop.f32.mrf.mxu0
    %2094 = vdwg.mxu0
    %2095 = vmatpush.bf16.msra.mxu0 %v1907
    %2096 = vmatpush.bf16.msra.mxu0 %v1904
    %2097 = vmatpush.bf16.msra.mxu0 %v1901
    %2098 = vmatpush.bf16.msra.mxu0 %v1898
    %2099 = vmatpush.bf16.msra.mxu0 %v1895
    %2100 = vmatpush.bf16.msra.mxu0 %v1892
    %2101 = vmatpush.bf16.msra.mxu0 %v1889
    %2102 = vmatpush.bf16.msra.mxu0 %v1886
    %2103 = vmatmul.bf16.gmra.mxu0 %v1514
    %v2104 = vpop.f32.mrf.mxu0
    %v2105 = vadd.f32 %v2092, %v2104
    %v2106 = vpop.f32.mrf.mxu0
    %2107 = vdwg.mxu0
    %2108 = vmatpush.bf16.msra.mxu0 %v1931
    %2109 = vmatpush.bf16.msra.mxu0 %v1928
    %2110 = vmatpush.bf16.msra.mxu0 %v1925
    %2111 = vmatpush.bf16.msra.mxu0 %v1922
    %2112 = vmatpush.bf16.msra.mxu0 %v1919
    %2113 = vmatpush.bf16.msra.mxu0 %v1916
    %2114 = vmatpush.bf16.msra.mxu0 %v1913
    %2115 = vmatpush.bf16.msra.mxu0 %v1910
    %2116 = vmatmul.bf16.gmra.mxu0 %v1515
    %v2117 = vpop.f32.mrf.mxu0
    %v2118 = vadd.f32 %v2105, %v2117
    %v2119 = vpop.f32.mrf.mxu0
    %2120 = vdwg.mxu0
    %v2121 = vmax.f32 %v2040, 0.0
    %v2122 = vmax.f32 %v2079, 0.0
    %v2123 = vmax.f32 %v2118, 0.0
    %2124 = vst [vmem:[#allocation10] sm:$0xff] %v2121
    %2125 = vst [vmem:[#allocation10 + $0x8] sm:$0xff] %v2122
    %2126 = vst [vmem:[#allocation10 + $0x10] sm:$0xff] %v2123
    // Predicated region
    $region38: #{tpu_custom_call.1} parent=1 // pred_check
      _
    $region39: #{tpu_custom_call.1} parent=1 // pred_check_branch
      %2128 = sbr.rel (0) target = $region41
    $region40: #{tpu_custom_call.1} parent=1 // pred_region
      %2130 = vsyncadd [#allocation4], 0
      %s2132 = sshll.u32 [#allocation10], 4
      %s2133 = int_to_ptr.vmem [resolvable:$true] %s2132
      %s2134 = sshll.u32 %s5, 4
      %s2135 = int_to_ptr.hbm [resolvable:$true] %s2134
      %2137 = dma.vmem_to_hbm [thread:$0]  %s2133, 384, %s2135, [#allocation4]
    $region41: #{tpu_custom_call.1} parent=1 // pred_fallthru
      _
    // Predicated region
    $region42: #{tpu_custom_call.1} parent=1 // pred_check
      _
    $region43: #{tpu_custom_call.1} parent=1 // pred_check_branch
      %2139 = sbr.rel (0) target = $region45
    $region44: #{tpu_custom_call.1} parent=1 // pred_region
      %2141 = dma.done [#allocation4], 384
    $region45: #{tpu_custom_call.1} parent=1 // pred_fallthru
      _
    %2142 = vsyncpa [#allocation3], 1
    %2143 = vsyncpa [#allocation6], 1
    %2144 = vsyncpa [#allocation9], 1
    %2145 = vsyncpa [#allocation4], 1

</llo_original>
